<compile_context>
chip_gen: v7x
topology: tpu7x:2x2x1
jax: 0.10.0
libtpu: 0.0.40
codegen_flags: <defaults>
</compile_context>

<pallas_src>
import numpy as np
import jax
import jax.numpy as jnp
from jax import lax
from jax.experimental import pallas as pl
from jax.experimental.pallas import tpu as pltpu


def _round_up(x, m):
    return ((x + m - 1) // m) * m


# ----------------------------- Pallas kernel --------------------------------
def _make_lstm_kernel(T):
    """Builds the kernel with the real (unpadded) number of time steps baked in."""

    def lstm_kernel(emb_ref, wih_ref, whh_ref, b_ref, wlin_ref, blin_ref,
                    out_ref, pg_scr):
        # emb_ref : (T_pad, BT, E)  time-major embeddings (E lane-padded, T zero-padded)
        # wih_ref : (E, 4H)   input->gate weights, gate column order [i, f, o, g]
        # whh_ref : (H, 4H)   hidden->gate weights, same column order
        # b_ref   : (1, 4H)   combined bias (b_ih + b_hh), same column order
        # wlin_ref: (1, H)    final linear weight row
        # blin_ref: (1, 1)    final linear bias
        # out_ref : (BT, 1)
        # pg_scr  : (T_CHUNK*BT, 4H)  pre-gate scratch for one time chunk
        T_pad, BT, E = emb_ref.shape
        H = whh_ref.shape[0]
        Tc = pg_scr.shape[0] // BT          # static time-chunk length

        h = jnp.zeros((BT, H), jnp.float32)
        c = jnp.zeros((BT, H), jnp.float32)

        # Time loop, fully unrolled (T is small & static here).  The hoisted
        # input projection x_t @ W_ih + b is done per chunk of Tc steps as one
        # tall MXU matmul into a bounded VMEM scratch; only h @ W_hh remains
        # on the serial critical path.
        for t0 in range(0, T_pad, Tc):
            x_chunk = emb_ref[pl.ds(t0, Tc), :, :].reshape(Tc * BT, E)
            pg_scr[...] = (jnp.dot(x_chunk, wih_ref[...],
                                   preferred_element_type=jnp.float32)
                           + b_ref[...])

            for tt in range(min(Tc, T - t0)):          # skip zero-padded steps
                gates = (jnp.dot(h, whh_ref[...],
                                 preferred_element_type=jnp.float32)
                         + pg_scr[pl.ds(tt * BT, BT), :])          # (BT, 4H)
                # Gate order [i, f, o, g]: one fused sigmoid (tanh form) over
                # the first 3H columns + one tanh over the last H columns.
                sig = 0.5 * jnp.tanh(0.5 * gates[:, :3 * H]) + 0.5
                g_g = jnp.tanh(gates[:, 3 * H:])
                c = sig[:, H:2 * H] * c + sig[:, :H] * g_g         # f*c + i*g
                h = sig[:, 2 * H:3 * H] * jnp.tanh(c)              # o*tanh(c)

        # Linear(H -> 1): VPU multiply + lane reduce (avoid an N=1 MXU matmul).
        out_ref[...] = (jnp.sum(h * wlin_ref[...], axis=1, keepdims=True)
                        + blin_ref[...])                           # (BT, 1)

    return lstm_kernel


# ------------------------------ wrapper --------------------------------------
def _reorder_gate_cols(w):
    """Permute last-dim gate blocks from PyTorch [i, f, g, o] to [i, f, o, g]."""
    i, f, g, o = jnp.split(w, 4, axis=-1)
    return jnp.concatenate([i, f, o, g], axis=-1)


def nlp_movie_lstm(X, params):
    """X: int32 (B, T) token ids. Returns (B, 1) float32 logits (no sigmoid)."""
    emb_w = params["emb"]            # (V, E)
    w_ih = params["w_ih"]            # (4H, E)  PyTorch layout, gate order i,f,g,o
    w_hh = params["w_hh"]            # (4H, H)
    b_ih = params["b_ih"]            # (4H,)
    b_hh = params["b_hh"]            # (4H,)
    w_lin = params["w_lin"]          # (1, H)
    b_lin = params["b_lin"]          # (1,)

    B, T = X.shape
    E = emb_w.shape[1]
    H = w_hh.shape[1]
    G4 = 4 * H

    # --- tiling ------------------------------------------------------------
    E_pad = _round_up(E, 128)                      # 100 -> 128 (lane aligned)

    # Grow the MXU M tile first (per-step h@W_hh latency is ~independent of M
    # up to the row tile), then add grid steps.  A single oversized tile is
    # split in two so v7x's second TensorCore gets work.
    BT = min(256, _round_up(B, 8))
    B_pad = _round_up(B, BT)
    if B_pad // BT == 1 and BT > 128:
        BT = _round_up(B_pad // 2, 8)
        B_pad = _round_up(B, BT)
    n_btiles = B_pad // BT

    # Bound the pre-gate scratch (<= ~4 MiB) by chunking the hoisted input
    # projection over time; keeps VMEM in budget for long T on v7x/v5e.
    PG_BUDGET_BYTES = 4 * 1024 * 1024
    step_bytes = BT * G4 * 4
    T_CHUNK = max(1, min(T, PG_BUDGET_BYTES // step_bytes))
    T_pad = _round_up(T, T_CHUNK)

    # --- glue: embedding gather + weight layout -----------------------------
    X_pad = jnp.pad(X, ((0, B_pad - B), (0, 0)))                    # pad batch (token 0)
    emb_w_p = jnp.pad(emb_w, ((0, 0), (0, E_pad - E)))              # padded cols = 0
    emb_tbe = jnp.take(emb_w_p, X_pad.T, axis=0)                    # (T, B_pad, E_pad)
    emb_tbe = jnp.pad(emb_tbe, ((0, T_pad - T), (0, 0), (0, 0)))    # zero-pad time

    wih_t = _reorder_gate_cols(
        jnp.pad(jnp.transpose(w_ih), ((0, E_pad - E), (0, 0))))     # (E_pad, 4H)
    whh_t = _reorder_gate_cols(jnp.transpose(w_hh))                 # (H, 4H)
    bias = _reorder_gate_cols((b_ih + b_hh).reshape(1, G4))         # (1, 4H)
    wlin = w_lin.reshape(1, H)                                      # (1, H)
    blin = b_lin.reshape(1, 1)                                      # (1, 1)

    # NOTE: constant-index-map weight inputs are still default double-buffered
    # (~0.5 MiB waste); pl.Buffered(1) would reclaim it once VMEM headroom
    # matters at production sizes.
    out = pl.pallas_call(
        _make_lstm_kernel(T),
        out_shape=jax.ShapeDtypeStruct((B_pad, 1), jnp.float32),
        grid_spec=pltpu.PrefetchScalarGridSpec(
            num_scalar_prefetch=0,
            grid=(n_btiles,),
            in_specs=[
                pl.BlockSpec((T_pad, BT, E_pad), lambda b: (0, b, 0)),  # emb tile (pipelined)
                pl.BlockSpec((E_pad, G4),        lambda b: (0, 0)),     # W_ih (resident)
                pl.BlockSpec((H, G4),            lambda b: (0, 0)),     # W_hh (resident)
                pl.BlockSpec((1, G4),            lambda b: (0, 0)),     # bias
                pl.BlockSpec((1, H),             lambda b: (0, 0)),     # w_lin
                pl.BlockSpec((1, 1),             lambda b: (0, 0)),     # b_lin
            ],
            out_specs=pl.BlockSpec((BT, 1), lambda b: (b, 0)),
            scratch_shapes=[
                pltpu.VMEM((T_CHUNK * BT, G4), jnp.float32),            # pre-gates
            ],
        ),
        compiler_params=pltpu.CompilerParams(
            dimension_semantics=("parallel",)),
    )(emb_tbe, wih_t, whh_t, bias, wlin, blin)

    return out[:B]


# ----------------------- pure-JAX reference (for check) ----------------------
def reference_forward(X, params):
    emb = jnp.take(params["emb"], X, axis=0)                       # (B, T, E)
    H = params["w_hh"].shape[1]
    w_ih, w_hh = params["w_ih"], params["w_hh"]
    b = params["b_ih"] + params["b_hh"]
    B, T, _ = emb.shape

    def step(carry, x_t):
        h, c = carry
        gates = x_t @ w_ih.T + h @ w_hh.T + b
        i = jax.nn.sigmoid(gates[:, :H])
        f = jax.nn.sigmoid(gates[:, H:2 * H])
        g = jnp.tanh(gates[:, 2 * H:3 * H])
        o = jax.nn.sigmoid(gates[:, 3 * H:])
        c = f * c + i * g
        h = o * jnp.tanh(c)
        return (h, c), None

    (h, _), _ = lax.scan(step, (jnp.zeros((B, H)), jnp.zeros((B, H))),
                         jnp.transpose(emb, (1, 0, 2)))
    return h @ params["w_lin"].T + params["b_lin"]                 # (B, 1)


# --------------------------------- main ---------------------------------------
if __name__ == "__main__":
    VOCAB, EMB, HID = 50, 100, 128
    B, T = 2, 8

    key = jax.random.PRNGKey(0)
    ks = jax.random.split(key, 8)
    params = {
        "emb":   jax.random.normal(ks[0], (VOCAB, EMB), jnp.float32) * 0.1,
        "w_ih":  jax.random.normal(ks[1], (4 * HID, EMB), jnp.float32) * 0.05,
        "w_hh":  jax.random.normal(ks[2], (4 * HID, HID), jnp.float32) * 0.05,
        "b_ih":  jax.random.normal(ks[3], (4 * HID,), jnp.float32) * 0.05,
        "b_hh":  jax.random.normal(ks[4], (4 * HID,), jnp.float32) * 0.05,
        "w_lin": jax.random.normal(ks[5], (1, HID), jnp.float32) * 0.05,
        "b_lin": jax.random.normal(ks[6], (1,), jnp.float32) * 0.05,
    }
    X = jax.random.randint(ks[7], (B, T), 0, VOCAB, dtype=jnp.int32)

    y = jax.block_until_ready(nlp_movie_lstm(X, params))
    y_ref = jax.block_until_ready(reference_forward(X, params))

    np.testing.assert_allclose(np.asarray(y), np.asarray(y_ref),
                               rtol=1e-3, atol=1e-3)
    assert y.shape == (B, 1) and y.dtype == jnp.float32
    print("KERNEL_OK")
</pallas_src>

<mosaic_0001>
module attributes {stable_mosaic.version = 11 : i64} {
  func.func @lstm_kernel(%arg0: i32, %arg1: memref<8x8x128xf32, #tpu.memory_space<vmem>>, %arg2: memref<128x512xf32, #tpu.memory_space<vmem>>, %arg3: memref<128x512xf32, #tpu.memory_space<vmem>>, %arg4: memref<1x512xf32, #tpu.memory_space<vmem>>, %arg5: memref<1x128xf32, #tpu.memory_space<vmem>>, %arg6: memref<1x1xf32, #tpu.memory_space<vmem>>, %arg7: memref<8x1xf32, #tpu.memory_space<vmem>>, %arg8: memref<64x512xf32, #tpu.memory_space<vmem>>) attributes {dimension_semantics = [#tpu.dimension_semantics<parallel>], iteration_bounds = array<i64: 1>, scalar_prefetch = 0 : i64, scratch_operands = 1 : i64, tpu.core_type = #tpu.core_type<tc>, window_params = [{transform_indices = @transform_0, window_bounds = array<i64: 8, 8, 128>}, {pipeline_mode = #tpu.pipeline_mode<synchronous>, transform_indices = @transform_1, window_bounds = array<i64: 128, 512>}, {pipeline_mode = #tpu.pipeline_mode<synchronous>, transform_indices = @transform_2, window_bounds = array<i64: 128, 512>}, {pipeline_mode = #tpu.pipeline_mode<synchronous>, transform_indices = @transform_3, window_bounds = array<i64: 1, 512>}, {pipeline_mode = #tpu.pipeline_mode<synchronous>, transform_indices = @transform_4, window_bounds = array<i64: 1, 128>}, {pipeline_mode = #tpu.pipeline_mode<synchronous>, transform_indices = @transform_5, window_bounds = array<i64: 1, 1>}, {transform_indices = @transform_6, window_bounds = array<i64: 8, 1>}]} {
    %cst = arith.constant 0.000000e+00 : f32
    %0 = vector.broadcast %cst : f32 to vector<8x128xf32>
    %cst_0 = arith.constant 0.000000e+00 : f32
    %1 = vector.broadcast %cst_0 : f32 to vector<8x128xf32>
    %c0 = arith.constant 0 : index
    %c0_1 = arith.constant 0 : index
    %c0_2 = arith.constant 0 : index
    %2 = vector.load %arg1[%c0, %c0_1, %c0_2] : memref<8x8x128xf32, #tpu.memory_space<vmem>>, vector<8x8x128xf32>
    %3 = vector.shape_cast %2 : vector<8x8x128xf32> to vector<64x128xf32>
    %c0_3 = arith.constant 0 : index
    %c0_4 = arith.constant 0 : index
    %4 = vector.load %arg2[%c0_3, %c0_4] : memref<128x512xf32, #tpu.memory_space<vmem>>, vector<128x512xf32>
    %cst_5 = arith.constant dense<0.000000e+00> : vector<64x512xf32>
    %5 = tpu.matmul %3, %4, %cst_5 {dimension_numbers = #tpu.dot_dimension_numbers<[1], [0], [0], [1], [0, 0, 1, 1], [], []>} : vector<64x128xf32>, vector<128x512xf32>, vector<64x512xf32> -> vector<64x512xf32>
    %c0_6 = arith.constant 0 : index
    %c0_7 = arith.constant 0 : index
    %6 = vector.load %arg4[%c0_6, %c0_7] : memref<1x512xf32, #tpu.memory_space<vmem>>, vector<1x512xf32>
    %7 = vector.broadcast %6 : vector<1x512xf32> to vector<64x512xf32>
    %8 = arith.addf %5, %7 : vector<64x512xf32>
    %c0_8 = arith.constant 0 : index
    %c0_9 = arith.constant 0 : index
    %9 = vector.load %arg8[%c0_8, %c0_9] : memref<64x512xf32, #tpu.memory_space<vmem>>, vector<64x512xf32>
    tpu.vector_store %arg8[%c0_8, %c0_9], %8 {strides = array<i32>} : memref<64x512xf32, #tpu.memory_space<vmem>>, vector<64x512xf32>,
    %c0_10 = arith.constant 0 : index
    %c0_11 = arith.constant 0 : index
    %10 = vector.load %arg3[%c0_10, %c0_11] : memref<128x512xf32, #tpu.memory_space<vmem>>, vector<128x512xf32>
    %cst_12 = arith.constant dense<0.000000e+00> : vector<8x512xf32>
    %11 = tpu.matmul %0, %10, %cst_12 {dimension_numbers = #tpu.dot_dimension_numbers<[1], [0], [0], [1], [0, 0, 1, 1], [], []>} : vector<8x128xf32>, vector<128x512xf32>, vector<8x512xf32> -> vector<8x512xf32>
    %c0_13 = arith.constant 0 : index
    %c0_14 = arith.constant 0 : index
    %12 = vector.load %arg8[%c0_13, %c0_14] : memref<64x512xf32, #tpu.memory_space<vmem>>, vector<8x512xf32>
    %13 = arith.addf %11, %12 : vector<8x512xf32>
    %14 = vector.extract_strided_slice %13 {offsets = [0, 0], sizes = [8, 384], strides = [1, 1]} : vector<8x512xf32> to vector<8x384xf32>
    %cst_15 = arith.constant 5.000000e-01 : f32
    %15 = vector.broadcast %cst_15 : f32 to vector<8x384xf32>
    %16 = arith.mulf %15, %14 : vector<8x384xf32>
    %17 = math.tanh %16 : vector<8x384xf32>
    %cst_16 = arith.constant 5.000000e-01 : f32
    %18 = vector.broadcast %cst_16 : f32 to vector<8x384xf32>
    %19 = arith.mulf %18, %17 : vector<8x384xf32>
    %cst_17 = arith.constant 5.000000e-01 : f32
    %20 = vector.broadcast %cst_17 : f32 to vector<8x384xf32>
    %21 = arith.addf %19, %20 : vector<8x384xf32>
    %22 = vector.extract_strided_slice %13 {offsets = [0, 384], sizes = [8, 128], strides = [1, 1]} : vector<8x512xf32> to vector<8x128xf32>
    %23 = math.tanh %22 : vector<8x128xf32>
    %24 = vector.extract_strided_slice %21 {offsets = [0, 128], sizes = [8, 128], strides = [1, 1]} : vector<8x384xf32> to vector<8x128xf32>
    %25 = arith.mulf %24, %1 : vector<8x128xf32>
    %26 = vector.extract_strided_slice %21 {offsets = [0, 0], sizes = [8, 128], strides = [1, 1]} : vector<8x384xf32> to vector<8x128xf32>
    %27 = arith.mulf %26, %23 : vector<8x128xf32>
    %28 = arith.addf %25, %27 : vector<8x128xf32>
    %29 = vector.extract_strided_slice %21 {offsets = [0, 256], sizes = [8, 128], strides = [1, 1]} : vector<8x384xf32> to vector<8x128xf32>
    %30 = math.tanh %28 : vector<8x128xf32>
    %31 = arith.mulf %29, %30 : vector<8x128xf32>
    %c0_18 = arith.constant 0 : index
    %c0_19 = arith.constant 0 : index
    %32 = vector.load %arg3[%c0_18, %c0_19] : memref<128x512xf32, #tpu.memory_space<vmem>>, vector<128x512xf32>
    %cst_20 = arith.constant dense<0.000000e+00> : vector<8x512xf32>
    %33 = tpu.matmul %31, %32, %cst_20 {dimension_numbers = #tpu.dot_dimension_numbers<[1], [0], [0], [1], [0, 0, 1, 1], [], []>} : vector<8x128xf32>, vector<128x512xf32>, vector<8x512xf32> -> vector<8x512xf32>
    %c8 = arith.constant 8 : index
    %c0_21 = arith.constant 0 : index
    %34 = vector.load %arg8[%c8, %c0_21] : memref<64x512xf32, #tpu.memory_space<vmem>>, vector<8x512xf32>
    %35 = arith.addf %33, %34 : vector<8x512xf32>
    %36 = vector.extract_strided_slice %35 {offsets = [0, 0], sizes = [8, 384], strides = [1, 1]} : vector<8x512xf32> to vector<8x384xf32>
    %cst_22 = arith.constant 5.000000e-01 : f32
    %37 = vector.broadcast %cst_22 : f32 to vector<8x384xf32>
    %38 = arith.mulf %37, %36 : vector<8x384xf32>
    %39 = math.tanh %38 : vector<8x384xf32>
    %cst_23 = arith.constant 5.000000e-01 : f32
    %40 = vector.broadcast %cst_23 : f32 to vector<8x384xf32>
    %41 = arith.mulf %40, %39 : vector<8x384xf32>
    %cst_24 = arith.constant 5.000000e-01 : f32
    %42 = vector.broadcast %cst_24 : f32 to vector<8x384xf32>
    %43 = arith.addf %41, %42 : vector<8x384xf32>
    %44 = vector.extract_strided_slice %35 {offsets = [0, 384], sizes = [8, 128], strides = [1, 1]} : vector<8x512xf32> to vector<8x128xf32>
    %45 = math.tanh %44 : vector<8x128xf32>
    %46 = vector.extract_strided_slice %43 {offsets = [0, 128], sizes = [8, 128], strides = [1, 1]} : vector<8x384xf32> to vector<8x128xf32>
    %47 = arith.mulf %46, %28 : vector<8x128xf32>
    %48 = vector.extract_strided_slice %43 {offsets = [0, 0], sizes = [8, 128], strides = [1, 1]} : vector<8x384xf32> to vector<8x128xf32>
    %49 = arith.mulf %48, %45 : vector<8x128xf32>
    %50 = arith.addf %47, %49 : vector<8x128xf32>
    %51 = vector.extract_strided_slice %43 {offsets = [0, 256], sizes = [8, 128], strides = [1, 1]} : vector<8x384xf32> to vector<8x128xf32>
    %52 = math.tanh %50 : vector<8x128xf32>
    %53 = arith.mulf %51, %52 : vector<8x128xf32>
    %c0_25 = arith.constant 0 : index
    %c0_26 = arith.constant 0 : index
    %54 = vector.load %arg3[%c0_25, %c0_26] : memref<128x512xf32, #tpu.memory_space<vmem>>, vector<128x512xf32>
    %cst_27 = arith.constant dense<0.000000e+00> : vector<8x512xf32>
    %55 = tpu.matmul %53, %54, %cst_27 {dimension_numbers = #tpu.dot_dimension_numbers<[1], [0], [0], [1], [0, 0, 1, 1], [], []>} : vector<8x128xf32>, vector<128x512xf32>, vector<8x512xf32> -> vector<8x512xf32>
    %c16 = arith.constant 16 : index
    %c0_28 = arith.constant 0 : index
    %56 = vector.load %arg8[%c16, %c0_28] : memref<64x512xf32, #tpu.memory_space<vmem>>, vector<8x512xf32>
    %57 = arith.addf %55, %56 : vector<8x512xf32>
    %58 = vector.extract_strided_slice %57 {offsets = [0, 0], sizes = [8, 384], strides = [1, 1]} : vector<8x512xf32> to vector<8x384xf32>
    %cst_29 = arith.constant 5.000000e-01 : f32
    %59 = vector.broadcast %cst_29 : f32 to vector<8x384xf32>
    %60 = arith.mulf %59, %58 : vector<8x384xf32>
    %61 = math.tanh %60 : vector<8x384xf32>
    %cst_30 = arith.constant 5.000000e-01 : f32
    %62 = vector.broadcast %cst_30 : f32 to vector<8x384xf32>
    %63 = arith.mulf %62, %61 : vector<8x384xf32>
    %cst_31 = arith.constant 5.000000e-01 : f32
    %64 = vector.broadcast %cst_31 : f32 to vector<8x384xf32>
    %65 = arith.addf %63, %64 : vector<8x384xf32>
    %66 = vector.extract_strided_slice %57 {offsets = [0, 384], sizes = [8, 128], strides = [1, 1]} : vector<8x512xf32> to vector<8x128xf32>
    %67 = math.tanh %66 : vector<8x128xf32>
    %68 = vector.extract_strided_slice %65 {offsets = [0, 128], sizes = [8, 128], strides = [1, 1]} : vector<8x384xf32> to vector<8x128xf32>
    %69 = arith.mulf %68, %50 : vector<8x128xf32>
    %70 = vector.extract_strided_slice %65 {offsets = [0, 0], sizes = [8, 128], strides = [1, 1]} : vector<8x384xf32> to vector<8x128xf32>
    %71 = arith.mulf %70, %67 : vector<8x128xf32>
    %72 = arith.addf %69, %71 : vector<8x128xf32>
    %73 = vector.extract_strided_slice %65 {offsets = [0, 256], sizes = [8, 128], strides = [1, 1]} : vector<8x384xf32> to vector<8x128xf32>
    %74 = math.tanh %72 : vector<8x128xf32>
    %75 = arith.mulf %73, %74 : vector<8x128xf32>
    %c0_32 = arith.constant 0 : index
    %c0_33 = arith.constant 0 : index
    %76 = vector.load %arg3[%c0_32, %c0_33] : memref<128x512xf32, #tpu.memory_space<vmem>>, vector<128x512xf32>
    %cst_34 = arith.constant dense<0.000000e+00> : vector<8x512xf32>
    %77 = tpu.matmul %75, %76, %cst_34 {dimension_numbers = #tpu.dot_dimension_numbers<[1], [0], [0], [1], [0, 0, 1, 1], [], []>} : vector<8x128xf32>, vector<128x512xf32>, vector<8x512xf32> -> vector<8x512xf32>
    %c24 = arith.constant 24 : index
    %c0_35 = arith.constant 0 : index
    %78 = vector.load %arg8[%c24, %c0_35] : memref<64x512xf32, #tpu.memory_space<vmem>>, vector<8x512xf32>
    %79 = arith.addf %77, %78 : vector<8x512xf32>
    %80 = vector.extract_strided_slice %79 {offsets = [0, 0], sizes = [8, 384], strides = [1, 1]} : vector<8x512xf32> to vector<8x384xf32>
    %cst_36 = arith.constant 5.000000e-01 : f32
    %81 = vector.broadcast %cst_36 : f32 to vector<8x384xf32>
    %82 = arith.mulf %81, %80 : vector<8x384xf32>
    %83 = math.tanh %82 : vector<8x384xf32>
    %cst_37 = arith.constant 5.000000e-01 : f32
    %84 = vector.broadcast %cst_37 : f32 to vector<8x384xf32>
    %85 = arith.mulf %84, %83 : vector<8x384xf32>
    %cst_38 = arith.constant 5.000000e-01 : f32
    %86 = vector.broadcast %cst_38 : f32 to vector<8x384xf32>
    %87 = arith.addf %85, %86 : vector<8x384xf32>
    %88 = vector.extract_strided_slice %79 {offsets = [0, 384], sizes = [8, 128], strides = [1, 1]} : vector<8x512xf32> to vector<8x128xf32>
    %89 = math.tanh %88 : vector<8x128xf32>
    %90 = vector.extract_strided_slice %87 {offsets = [0, 128], sizes = [8, 128], strides = [1, 1]} : vector<8x384xf32> to vector<8x128xf32>
    %91 = arith.mulf %90, %72 : vector<8x128xf32>
    %92 = vector.extract_strided_slice %87 {offsets = [0, 0], sizes = [8, 128], strides = [1, 1]} : vector<8x384xf32> to vector<8x128xf32>
    %93 = arith.mulf %92, %89 : vector<8x128xf32>
    %94 = arith.addf %91, %93 : vector<8x128xf32>
    %95 = vector.extract_strided_slice %87 {offsets = [0, 256], sizes = [8, 128], strides = [1, 1]} : vector<8x384xf32> to vector<8x128xf32>
    %96 = math.tanh %94 : vector<8x128xf32>
    %97 = arith.mulf %95, %96 : vector<8x128xf32>
    %c0_39 = arith.constant 0 : index
    %c0_40 = arith.constant 0 : index
    %98 = vector.load %arg3[%c0_39, %c0_40] : memref<128x512xf32, #tpu.memory_space<vmem>>, vector<128x512xf32>
    %cst_41 = arith.constant dense<0.000000e+00> : vector<8x512xf32>
    %99 = tpu.matmul %97, %98, %cst_41 {dimension_numbers = #tpu.dot_dimension_numbers<[1], [0], [0], [1], [0, 0, 1, 1], [], []>} : vector<8x128xf32>, vector<128x512xf32>, vector<8x512xf32> -> vector<8x512xf32>
    %c32 = arith.constant 32 : index
    %c0_42 = arith.constant 0 : index
    %100 = vector.load %arg8[%c32, %c0_42] : memref<64x512xf32, #tpu.memory_space<vmem>>, vector<8x512xf32>
    %101 = arith.addf %99, %100 : vector<8x512xf32>
    %102 = vector.extract_strided_slice %101 {offsets = [0, 0], sizes = [8, 384], strides = [1, 1]} : vector<8x512xf32> to vector<8x384xf32>
    %cst_43 = arith.constant 5.000000e-01 : f32
    %103 = vector.broadcast %cst_43 : f32 to vector<8x384xf32>
    %104 = arith.mulf %103, %102 : vector<8x384xf32>
    %105 = math.tanh %104 : vector<8x384xf32>
    %cst_44 = arith.constant 5.000000e-01 : f32
    %106 = vector.broadcast %cst_44 : f32 to vector<8x384xf32>
    %107 = arith.mulf %106, %105 : vector<8x384xf32>
    %cst_45 = arith.constant 5.000000e-01 : f32
    %108 = vector.broadcast %cst_45 : f32 to vector<8x384xf32>
    %109 = arith.addf %107, %108 : vector<8x384xf32>
    %110 = vector.extract_strided_slice %101 {offsets = [0, 384], sizes = [8, 128], strides = [1, 1]} : vector<8x512xf32> to vector<8x128xf32>
    %111 = math.tanh %110 : vector<8x128xf32>
    %112 = vector.extract_strided_slice %109 {offsets = [0, 128], sizes = [8, 128], strides = [1, 1]} : vector<8x384xf32> to vector<8x128xf32>
    %113 = arith.mulf %112, %94 : vector<8x128xf32>
    %114 = vector.extract_strided_slice %109 {offsets = [0, 0], sizes = [8, 128], strides = [1, 1]} : vector<8x384xf32> to vector<8x128xf32>
    %115 = arith.mulf %114, %111 : vector<8x128xf32>
    %116 = arith.addf %113, %115 : vector<8x128xf32>
    %117 = vector.extract_strided_slice %109 {offsets = [0, 256], sizes = [8, 128], strides = [1, 1]} : vector<8x384xf32> to vector<8x128xf32>
    %118 = math.tanh %116 : vector<8x128xf32>
    %119 = arith.mulf %117, %118 : vector<8x128xf32>
    %c0_46 = arith.constant 0 : index
    %c0_47 = arith.constant 0 : index
    %120 = vector.load %arg3[%c0_46, %c0_47] : memref<128x512xf32, #tpu.memory_space<vmem>>, vector<128x512xf32>
    %cst_48 = arith.constant dense<0.000000e+00> : vector<8x512xf32>
    %121 = tpu.matmul %119, %120, %cst_48 {dimension_numbers = #tpu.dot_dimension_numbers<[1], [0], [0], [1], [0, 0, 1, 1], [], []>} : vector<8x128xf32>, vector<128x512xf32>, vector<8x512xf32> -> vector<8x512xf32>
    %c40 = arith.constant 40 : index
    %c0_49 = arith.constant 0 : index
    %122 = vector.load %arg8[%c40, %c0_49] : memref<64x512xf32, #tpu.memory_space<vmem>>, vector<8x512xf32>
    %123 = arith.addf %121, %122 : vector<8x512xf32>
    %124 = vector.extract_strided_slice %123 {offsets = [0, 0], sizes = [8, 384], strides = [1, 1]} : vector<8x512xf32> to vector<8x384xf32>
    %cst_50 = arith.constant 5.000000e-01 : f32
    %125 = vector.broadcast %cst_50 : f32 to vector<8x384xf32>
    %126 = arith.mulf %125, %124 : vector<8x384xf32>
    %127 = math.tanh %126 : vector<8x384xf32>
    %cst_51 = arith.constant 5.000000e-01 : f32
    %128 = vector.broadcast %cst_51 : f32 to vector<8x384xf32>
    %129 = arith.mulf %128, %127 : vector<8x384xf32>
    %cst_52 = arith.constant 5.000000e-01 : f32
    %130 = vector.broadcast %cst_52 : f32 to vector<8x384xf32>
    %131 = arith.addf %129, %130 : vector<8x384xf32>
    %132 = vector.extract_strided_slice %123 {offsets = [0, 384], sizes = [8, 128], strides = [1, 1]} : vector<8x512xf32> to vector<8x128xf32>
    %133 = math.tanh %132 : vector<8x128xf32>
    %134 = vector.extract_strided_slice %131 {offsets = [0, 128], sizes = [8, 128], strides = [1, 1]} : vector<8x384xf32> to vector<8x128xf32>
    %135 = arith.mulf %134, %116 : vector<8x128xf32>
    %136 = vector.extract_strided_slice %131 {offsets = [0, 0], sizes = [8, 128], strides = [1, 1]} : vector<8x384xf32> to vector<8x128xf32>
    %137 = arith.mulf %136, %133 : vector<8x128xf32>
    %138 = arith.addf %135, %137 : vector<8x128xf32>
    %139 = vector.extract_strided_slice %131 {offsets = [0, 256], sizes = [8, 128], strides = [1, 1]} : vector<8x384xf32> to vector<8x128xf32>
    %140 = math.tanh %138 : vector<8x128xf32>
    %141 = arith.mulf %139, %140 : vector<8x128xf32>
    %c0_53 = arith.constant 0 : index
    %c0_54 = arith.constant 0 : index
    %142 = vector.load %arg3[%c0_53, %c0_54] : memref<128x512xf32, #tpu.memory_space<vmem>>, vector<128x512xf32>
    %cst_55 = arith.constant dense<0.000000e+00> : vector<8x512xf32>
    %143 = tpu.matmul %141, %142, %cst_55 {dimension_numbers = #tpu.dot_dimension_numbers<[1], [0], [0], [1], [0, 0, 1, 1], [], []>} : vector<8x128xf32>, vector<128x512xf32>, vector<8x512xf32> -> vector<8x512xf32>
    %c48 = arith.constant 48 : index
    %c0_56 = arith.constant 0 : index
    %144 = vector.load %arg8[%c48, %c0_56] : memref<64x512xf32, #tpu.memory_space<vmem>>, vector<8x512xf32>
    %145 = arith.addf %143, %144 : vector<8x512xf32>
    %146 = vector.extract_strided_slice %145 {offsets = [0, 0], sizes = [8, 384], strides = [1, 1]} : vector<8x512xf32> to vector<8x384xf32>
    %cst_57 = arith.constant 5.000000e-01 : f32
    %147 = vector.broadcast %cst_57 : f32 to vector<8x384xf32>
    %148 = arith.mulf %147, %146 : vector<8x384xf32>
    %149 = math.tanh %148 : vector<8x384xf32>
    %cst_58 = arith.constant 5.000000e-01 : f32
    %150 = vector.broadcast %cst_58 : f32 to vector<8x384xf32>
    %151 = arith.mulf %150, %149 : vector<8x384xf32>
    %cst_59 = arith.constant 5.000000e-01 : f32
    %152 = vector.broadcast %cst_59 : f32 to vector<8x384xf32>
    %153 = arith.addf %151, %152 : vector<8x384xf32>
    %154 = vector.extract_strided_slice %145 {offsets = [0, 384], sizes = [8, 128], strides = [1, 1]} : vector<8x512xf32> to vector<8x128xf32>
    %155 = math.tanh %154 : vector<8x128xf32>
    %156 = vector.extract_strided_slice %153 {offsets = [0, 128], sizes = [8, 128], strides = [1, 1]} : vector<8x384xf32> to vector<8x128xf32>
    %157 = arith.mulf %156, %138 : vector<8x128xf32>
    %158 = vector.extract_strided_slice %153 {offsets = [0, 0], sizes = [8, 128], strides = [1, 1]} : vector<8x384xf32> to vector<8x128xf32>
    %159 = arith.mulf %158, %155 : vector<8x128xf32>
    %160 = arith.addf %157, %159 : vector<8x128xf32>
    %161 = vector.extract_strided_slice %153 {offsets = [0, 256], sizes = [8, 128], strides = [1, 1]} : vector<8x384xf32> to vector<8x128xf32>
    %162 = math.tanh %160 : vector<8x128xf32>
    %163 = arith.mulf %161, %162 : vector<8x128xf32>
    %c0_60 = arith.constant 0 : index
    %c0_61 = arith.constant 0 : index
    %164 = vector.load %arg3[%c0_60, %c0_61] : memref<128x512xf32, #tpu.memory_space<vmem>>, vector<128x512xf32>
    %cst_62 = arith.constant dense<0.000000e+00> : vector<8x512xf32>
    %165 = tpu.matmul %163, %164, %cst_62 {dimension_numbers = #tpu.dot_dimension_numbers<[1], [0], [0], [1], [0, 0, 1, 1], [], []>} : vector<8x128xf32>, vector<128x512xf32>, vector<8x512xf32> -> vector<8x512xf32>
    %c56 = arith.constant 56 : index
    %c0_63 = arith.constant 0 : index
    %166 = vector.load %arg8[%c56, %c0_63] : memref<64x512xf32, #tpu.memory_space<vmem>>, vector<8x512xf32>
    %167 = arith.addf %165, %166 : vector<8x512xf32>
    %168 = vector.extract_strided_slice %167 {offsets = [0, 0], sizes = [8, 384], strides = [1, 1]} : vector<8x512xf32> to vector<8x384xf32>
    %cst_64 = arith.constant 5.000000e-01 : f32
    %169 = vector.broadcast %cst_64 : f32 to vector<8x384xf32>
    %170 = arith.mulf %169, %168 : vector<8x384xf32>
    %171 = math.tanh %170 : vector<8x384xf32>
    %cst_65 = arith.constant 5.000000e-01 : f32
    %172 = vector.broadcast %cst_65 : f32 to vector<8x384xf32>
    %173 = arith.mulf %172, %171 : vector<8x384xf32>
    %cst_66 = arith.constant 5.000000e-01 : f32
    %174 = vector.broadcast %cst_66 : f32 to vector<8x384xf32>
    %175 = arith.addf %173, %174 : vector<8x384xf32>
    %176 = vector.extract_strided_slice %167 {offsets = [0, 384], sizes = [8, 128], strides = [1, 1]} : vector<8x512xf32> to vector<8x128xf32>
    %177 = math.tanh %176 : vector<8x128xf32>
    %178 = vector.extract_strided_slice %175 {offsets = [0, 128], sizes = [8, 128], strides = [1, 1]} : vector<8x384xf32> to vector<8x128xf32>
    %179 = arith.mulf %178, %160 : vector<8x128xf32>
    %180 = vector.extract_strided_slice %175 {offsets = [0, 0], sizes = [8, 128], strides = [1, 1]} : vector<8x384xf32> to vector<8x128xf32>
    %181 = arith.mulf %180, %177 : vector<8x128xf32>
    %182 = arith.addf %179, %181 : vector<8x128xf32>
    %183 = vector.extract_strided_slice %175 {offsets = [0, 256], sizes = [8, 128], strides = [1, 1]} : vector<8x384xf32> to vector<8x128xf32>
    %184 = math.tanh %182 : vector<8x128xf32>
    %185 = arith.mulf %183, %184 : vector<8x128xf32>
    %c0_67 = arith.constant 0 : index
    %c0_68 = arith.constant 0 : index
    %186 = vector.load %arg5[%c0_67, %c0_68] : memref<1x128xf32, #tpu.memory_space<vmem>>, vector<1x128xf32>
    %187 = vector.broadcast %186 : vector<1x128xf32> to vector<8x128xf32>
    %188 = arith.mulf %185, %187 : vector<8x128xf32>
    %cst_69 = arith.constant dense<0.000000e+00> : vector<8xf32>
    %189 = vector.multi_reduction <add>, %188, %cst_69 [1] : vector<8x128xf32> to vector<8xf32>
    %190 = vector.shape_cast %189 : vector<8xf32> to vector<8x1xf32>
    %c0_70 = arith.constant 0 : index
    %c0_71 = arith.constant 0 : index
    %191 = vector.load %arg6[%c0_70, %c0_71] : memref<1x1xf32, #tpu.memory_space<vmem>>, vector<1x1xf32>
    %192 = vector.broadcast %191 : vector<1x1xf32> to vector<8x1xf32>
    %193 = arith.addf %190, %192 : vector<8x1xf32>
    %c0_72 = arith.constant 0 : index
    %c0_73 = arith.constant 0 : index
    %194 = vector.load %arg7[%c0_72, %c0_73] : memref<8x1xf32, #tpu.memory_space<vmem>>, vector<8x1xf32>
    tpu.vector_store %arg7[%c0_72, %c0_73], %193 {strides = array<i32>} : memref<8x1xf32, #tpu.memory_space<vmem>>, vector<8x1xf32>,
    return
  }
  func.func @transform_0(%arg0: i32) -> (i32, i32, i32) {
    %c0_i32 = arith.constant 0 : i32
    %c0_i32_0 = arith.constant 0 : i32
    %c0_i32_1 = arith.constant 0 : i32
    return %c0_i32, %arg0, %c0_i32_0 : i32, i32, i32
  }
  func.func @transform_1(%arg0: i32) -> (i32, i32) {
    %c0_i32 = arith.constant 0 : i32
    %c0_i32_0 = arith.constant 0 : i32
    %c0_i32_1 = arith.constant 0 : i32
    return %c0_i32, %c0_i32_0 : i32, i32
  }
  func.func @transform_2(%arg0: i32) -> (i32, i32) {
    %c0_i32 = arith.constant 0 : i32
    %c0_i32_0 = arith.constant 0 : i32
    %c0_i32_1 = arith.constant 0 : i32
    return %c0_i32, %c0_i32_0 : i32, i32
  }
  func.func @transform_3(%arg0: i32) -> (i32, i32) {
    %c0_i32 = arith.constant 0 : i32
    %c0_i32_0 = arith.constant 0 : i32
    %c0_i32_1 = arith.constant 0 : i32
    return %c0_i32, %c0_i32_0 : i32, i32
  }
  func.func @transform_4(%arg0: i32) -> (i32, i32) {
    %c0_i32 = arith.constant 0 : i32
    %c0_i32_0 = arith.constant 0 : i32
    %c0_i32_1 = arith.constant 0 : i32
    return %c0_i32, %c0_i32_0 : i32, i32
  }
  func.func @transform_5(%arg0: i32) -> (i32, i32) {
    %c0_i32 = arith.constant 0 : i32
    %c0_i32_0 = arith.constant 0 : i32
    %c0_i32_1 = arith.constant 0 : i32
    return %c0_i32, %c0_i32_0 : i32, i32
  }
  func.func @transform_6(%arg0: i32) -> (i32, i32) {
    %c0_i32 = arith.constant 0 : i32
    %c0_i32_0 = arith.constant 0 : i32
    return %arg0, %c0_i32 : i32, i32
  }
}

</mosaic_0001>

<llo_original>
// kernel: tpu_custom_call.1
$region0: #{tpu_custom_call.1}
  #allocation0 [shape = 'u32[]', space=smem, size = 0x4, offset = 0x4, fixed_abs, tag = 'smem constant byte address 0x4 - core index']
  #allocation1 [shape = 'u32[144,128]{1,0:T(1,128)}', space=vmem, size = 0x12000, scoped, tag = 'internal scratch']
  #allocation2 [shape = 'f32[64,512]{1,0:T(8,128)}', space=vmem, size = 0x20000, scoped, tag = 'scratch operand']
  #allocation3 [shape = 'f32[1,1]{1,0:T(1,128)S(1)}', space=vmem, size = 0x200, scoped, tag = 'scoped memory for tpu_custom_call.1']
  %s0 = inlined_call_operand.hbm [shape: f32[8,8,128], index: 0, kind: input, shape index: {}]
  %s1 = inlined_call_operand.hbm [shape: f32[128,512], index: 1, kind: input, shape index: {}]
  %s2 = inlined_call_operand.hbm [shape: f32[128,512], index: 2, kind: input, shape index: {}]
  %s3 = inlined_call_operand.vmem [shape: f32[1,512], index: 3, kind: input, shape index: {}]
  %s4 = inlined_call_operand.vmem [shape: f32[1,128], index: 4, kind: input, shape index: {}]
  %s5 = inlined_call_operand.<no memory space> [shape: f32[1,1], index: 5, kind: input, shape index: {}]
  %s6 = inlined_call_operand.vmem [shape: f32[8,1], index: 6, kind: output, shape index: {}]
  %s7 = sld [smem:[#allocation0]]
  $region46: #{tpu_custom_call.1} parent=0
    _
  %s9 = ssub.s32 1, %s7
  %s10 = scalar_select 0, %s9, %s7
  %v11 = vstv %s5
  %12 = vst [vmem:[#allocation3] sm:$0x1] %v11
  $region1: #{tpu_custom_call.1} parent=0
    #allocation4 [shape = 'u8[32768]{0}', space=vmem, size = 0x8000, scoped, tag = 'input window, operand 0, single buffered']
    #allocation5 [shape = 's32[1]{0}', space=sflag, size = 0x4, scoped, tag = 'scoped memory for tpu_custom_call.1']
    #allocation6 [shape = 'u8[262144]{0}', space=vmem, size = 0x40000, scoped, tag = 'input window, operand 1, single buffered']
    #allocation7 [shape = 's32[1]{0}', space=sflag, size = 0x4, scoped, tag = 'scoped memory for tpu_custom_call.1']
    #allocation8 [shape = 'u8[262144]{0}', space=vmem, size = 0x40000, scoped, tag = 'input window, operand 2, single buffered']
    %13 = vsyncpa [#allocation5], 0
    %14 = vsyncpa [#allocation7], 0
    // Predicated region
    $region2: #{tpu_custom_call.1} parent=1 // pred_check
      _
    $region3: #{tpu_custom_call.1} parent=1 // pred_check_branch
      %16 = sbr.rel (0) target = $region5
    $region4: #{tpu_custom_call.1} parent=1 // pred_region
      %s18 = ssub.s32 1024, 1024
      %19 = vsyncadd [#allocation5], %s18
      %s20 = sshll.u32 [#allocation4], 4
      %s21 = int_to_ptr.vmem [resolvable:$true] %s20
      %26 = dma.hbm_to_vmem [thread:$0]  %s0, 1024, %s21, [#allocation5], 128, 128, 8
    $region5: #{tpu_custom_call.1} parent=1 // pred_fallthru
      _
    // Predicated region
    $region6: #{tpu_custom_call.1} parent=1 // pred_check
      _
    $region7: #{tpu_custom_call.1} parent=1 // pred_check_branch
      %28 = sbr.rel (0) target = $region9
    $region8: #{tpu_custom_call.1} parent=1 // pred_region
      %s30 = ssub.s32 8192, 8192
      %31 = vsyncadd [#allocation7], %s30
      %s32 = sshll.u32 [#allocation6], 4
      %s33 = int_to_ptr.vmem [resolvable:$true] %s32
      %38 = dma.hbm_to_vmem [thread:$0]  %s1, 8192, %s33, [#allocation7], 512, 512, 32
    $region9: #{tpu_custom_call.1} parent=1 // pred_fallthru
      _
    // Predicated region
    $region10: #{tpu_custom_call.1} parent=1 // pred_check
      _
    $region11: #{tpu_custom_call.1} parent=1 // pred_check_branch
      %40 = sbr.rel (0) target = $region13
    $region12: #{tpu_custom_call.1} parent=1 // pred_region
      %s42 = ssub.s32 8192, 8192
      %43 = vsyncadd [#allocation7], %s42
      %s44 = sshll.u32 [#allocation8], 4
      %s45 = int_to_ptr.vmem [resolvable:$true] %s44
      %50 = dma.hbm_to_vmem [thread:$0]  %s2, 8192, %s45, [#allocation7], 512, 512, 32
    $region13: #{tpu_custom_call.1} parent=1 // pred_fallthru
      _
    // Predicated region
    $region14: #{tpu_custom_call.1} parent=1 // pred_check
      _
    $region15: #{tpu_custom_call.1} parent=1 // pred_check_branch
      %52 = sbr.rel (0) target = $region17
    $region16: #{tpu_custom_call.1} parent=1 // pred_region
      _
    $region17: #{tpu_custom_call.1} parent=1 // pred_fallthru
      _
    // Predicated region
    $region18: #{tpu_custom_call.1} parent=1 // pred_check
      _
    $region19: #{tpu_custom_call.1} parent=1 // pred_check_branch
      %54 = sbr.rel (0) target = $region21
    $region20: #{tpu_custom_call.1} parent=1 // pred_region
      _
    $region21: #{tpu_custom_call.1} parent=1 // pred_fallthru
      _
    // Predicated region
    $region22: #{tpu_custom_call.1} parent=1 // pred_check
      _
    $region23: #{tpu_custom_call.1} parent=1 // pred_check_branch
      %56 = sbr.rel (0) target = $region25
    $region24: #{tpu_custom_call.1} parent=1 // pred_region
      _
    $region25: #{tpu_custom_call.1} parent=1 // pred_fallthru
      _
    // Predicated region
    $region26: #{tpu_custom_call.1} parent=1 // pred_check
      _
    $region27: #{tpu_custom_call.1} parent=1 // pred_check_branch
      %58 = sbr.rel (0) target = $region29
    $region28: #{tpu_custom_call.1} parent=1 // pred_region
      %59 = dma.done [#allocation5], 1024
    $region29: #{tpu_custom_call.1} parent=1 // pred_fallthru
      _
    // Predicated region
    $region30: #{tpu_custom_call.1} parent=1 // pred_check
      _
    $region31: #{tpu_custom_call.1} parent=1 // pred_check_branch
      %61 = sbr.rel (0) target = $region33
    $region32: #{tpu_custom_call.1} parent=1 // pred_region
      %62 = dma.done [#allocation7], 8192
    $region33: #{tpu_custom_call.1} parent=1 // pred_fallthru
      _
    // Predicated region
    $region34: #{tpu_custom_call.1} parent=1 // pred_check
      _
    $region35: #{tpu_custom_call.1} parent=1 // pred_check_branch
      %64 = sbr.rel (0) target = $region37
    $region36: #{tpu_custom_call.1} parent=1 // pred_region
      %65 = dma.done [#allocation7], 8192
    $region37: #{tpu_custom_call.1} parent=1 // pred_fallthru
      _
    %v66 = vld [vmem:[#allocation4] sm:$0xff]
    %v67 = vld [vmem:[#allocation4 + $0x8] sm:$0xff]
    %v68 = vld [vmem:[#allocation4 + $0x10] sm:$0xff]
    %v69 = vld [vmem:[#allocation4 + $0x18] sm:$0xff]
    %v70 = vld [vmem:[#allocation4 + $0x20] sm:$0xff]
    %v71 = vld [vmem:[#allocation4 + $0x28] sm:$0xff]
    %v72 = vld [vmem:[#allocation4 + $0x30] sm:$0xff]
    %v73 = vld [vmem:[#allocation4 + $0x38] sm:$0xff]
    %v74 = vld [vmem:[#allocation6] sm:$0xff]
    %v75 = vld [vmem:[#allocation6 + $0x8] sm:$0xff]
    %v76 = vld [vmem:[#allocation6 + $0x10] sm:$0xff]
    %v77 = vld [vmem:[#allocation6 + $0x18] sm:$0xff]
    %v78 = vld [vmem:[#allocation6 + $0x20] sm:$0xff]
    %v79 = vld [vmem:[#allocation6 + $0x28] sm:$0xff]
    %v80 = vld [vmem:[#allocation6 + $0x30] sm:$0xff]
    %v81 = vld [vmem:[#allocation6 + $0x38] sm:$0xff]
    %v82 = vld [vmem:[#allocation6 + $0x40] sm:$0xff]
    %v83 = vld [vmem:[#allocation6 + $0x48] sm:$0xff]
    %v84 = vld [vmem:[#allocation6 + $0x50] sm:$0xff]
    %v85 = vld [vmem:[#allocation6 + $0x58] sm:$0xff]
    %v86 = vld [vmem:[#allocation6 + $0x60] sm:$0xff]
    %v87 = vld [vmem:[#allocation6 + $0x68] sm:$0xff]
    %v88 = vld [vmem:[#allocation6 + $0x70] sm:$0xff]
    %v89 = vld [vmem:[#allocation6 + $0x78] sm:$0xff]
    %v90 = vld [vmem:[#allocation6 + $0x80] sm:$0xff]
    %v91 = vld [vmem:[#allocation6 + $0x88] sm:$0xff]
    %v92 = vld [vmem:[#allocation6 + $0x90] sm:$0xff]
    %v93 = vld [vmem:[#allocation6 + $0x98] sm:$0xff]
    %v94 = vld [vmem:[#allocation6 + $0xa0] sm:$0xff]
    %v95 = vld [vmem:[#allocation6 + $0xa8] sm:$0xff]
    %v96 = vld [vmem:[#allocation6 + $0xb0] sm:$0xff]
    %v97 = vld [vmem:[#allocation6 + $0xb8] sm:$0xff]
    %v98 = vld [vmem:[#allocation6 + $0xc0] sm:$0xff]
    %v99 = vld [vmem:[#allocation6 + $0xc8] sm:$0xff]
    %v100 = vld [vmem:[#allocation6 + $0xd0] sm:$0xff]
    %v101 = vld [vmem:[#allocation6 + $0xd8] sm:$0xff]
    %v102 = vld [vmem:[#allocation6 + $0xe0] sm:$0xff]
    %v103 = vld [vmem:[#allocation6 + $0xe8] sm:$0xff]
    %v104 = vld [vmem:[#allocation6 + $0xf0] sm:$0xff]
    %v105 = vld [vmem:[#allocation6 + $0xf8] sm:$0xff]
    %v106 = vld [vmem:[#allocation6 + $0x100] sm:$0xff]
    %v107 = vld [vmem:[#allocation6 + $0x108] sm:$0xff]
    %v108 = vld [vmem:[#allocation6 + $0x110] sm:$0xff]
    %v109 = vld [vmem:[#allocation6 + $0x118] sm:$0xff]
    %v110 = vld [vmem:[#allocation6 + $0x120] sm:$0xff]
    %v111 = vld [vmem:[#allocation6 + $0x128] sm:$0xff]
    %v112 = vld [vmem:[#allocation6 + $0x130] sm:$0xff]
    %v113 = vld [vmem:[#allocation6 + $0x138] sm:$0xff]
    %v114 = vld [vmem:[#allocation6 + $0x140] sm:$0xff]
    %v115 = vld [vmem:[#allocation6 + $0x148] sm:$0xff]
    %v116 = vld [vmem:[#allocation6 + $0x150] sm:$0xff]
    %v117 = vld [vmem:[#allocation6 + $0x158] sm:$0xff]
    %v118 = vld [vmem:[#allocation6 + $0x160] sm:$0xff]
    %v119 = vld [vmem:[#allocation6 + $0x168] sm:$0xff]
    %v120 = vld [vmem:[#allocation6 + $0x170] sm:$0xff]
    %v121 = vld [vmem:[#allocation6 + $0x178] sm:$0xff]
    %v122 = vld [vmem:[#allocation6 + $0x180] sm:$0xff]
    %v123 = vld [vmem:[#allocation6 + $0x188] sm:$0xff]
    %v124 = vld [vmem:[#allocation6 + $0x190] sm:$0xff]
    %v125 = vld [vmem:[#allocation6 + $0x198] sm:$0xff]
    %v126 = vld [vmem:[#allocation6 + $0x1a0] sm:$0xff]
    %v127 = vld [vmem:[#allocation6 + $0x1a8] sm:$0xff]
    %v128 = vld [vmem:[#allocation6 + $0x1b0] sm:$0xff]
    %v129 = vld [vmem:[#allocation6 + $0x1b8] sm:$0xff]
    %v130 = vld [vmem:[#allocation6 + $0x1c0] sm:$0xff]
    %v131 = vld [vmem:[#allocation6 + $0x1c8] sm:$0xff]
    %v132 = vld [vmem:[#allocation6 + $0x1d0] sm:$0xff]
    %v133 = vld [vmem:[#allocation6 + $0x1d8] sm:$0xff]
    %v134 = vld [vmem:[#allocation6 + $0x1e0] sm:$0xff]
    %v135 = vld [vmem:[#allocation6 + $0x1e8] sm:$0xff]
    %v136 = vld [vmem:[#allocation6 + $0x1f0] sm:$0xff]
    %v137 = vld [vmem:[#allocation6 + $0x1f8] sm:$0xff]
    %v138 = vld [vmem:[%s3] sm:$0xf]
    %v140 = vlaneseq
    %v141 = vshrl.u32 %v140, 7
    %v142 = vsub.s32 0, %v141
    %v143 = vrot.slane %v138, %v142
    %v144 = vlaneseq
    %v145 = vshrl.u32 %v144, 7
    %v146 = vsub.s32 1, %v145
    %v147 = vrot.slane %v138, %v146
    %v148 = vlaneseq
    %v149 = vshrl.u32 %v148, 7
    %v150 = vsub.s32 2, %v149
    %v151 = vrot.slane %v138, %v150
    %v152 = vlaneseq
    %v153 = vshrl.u32 %v152, 7
    %v154 = vsub.s32 3, %v153
    %v155 = vrot.slane %v138, %v154
    %160 = vmatprep.subr.mxu0 %v75
    %161 = vmatpush1.msra.mxu0 %v74
    %162 = vmatprep.subr.mxu0 %v79
    %163 = vmatpush1.msra.mxu0 %v78
    %164 = vmatprep.subr.mxu0 %v83
    %165 = vmatpush1.msra.mxu0 %v82
    %166 = vmatprep.subr.mxu0 %v87
    %167 = vmatpush1.msra.mxu0 %v86
    %168 = vmatprep.subr.mxu0 %v91
    %169 = vmatpush1.msra.mxu0 %v90
    %170 = vmatprep.subr.mxu0 %v95
    %171 = vmatpush1.msra.mxu0 %v94
    %172 = vmatprep.subr.mxu0 %v99
    %173 = vmatpush1.msra.mxu0 %v98
    %174 = vmatprep.subr.mxu0 %v103
    %175 = vmatpush1.msra.mxu0 %v102
    %176 = vmatprep.subr.mxu0 %v107
    %177 = vmatpush1.msra.mxu0 %v106
    %178 = vmatprep.subr.mxu0 %v111
    %179 = vmatpush1.msra.mxu0 %v110
    %180 = vmatprep.subr.mxu0 %v115
    %181 = vmatpush1.msra.mxu0 %v114
    %182 = vmatprep.subr.mxu0 %v119
    %183 = vmatpush1.msra.mxu0 %v118
    %184 = vmatprep.subr.mxu0 %v123
    %185 = vmatpush1.msra.mxu0 %v122
    %186 = vmatprep.subr.mxu0 %v127
    %187 = vmatpush1.msra.mxu0 %v126
    %188 = vmatprep.subr.mxu0 %v131
    %189 = vmatpush1.msra.mxu0 %v130
    %190 = vmatprep.subr.mxu0 %v135
    %191 = vmatpush1.msra.mxu0 %v134
    %192 = vmatprep.subr.mxu0 0.0
    %193 = vmatpush1.msra.mxu0 0.0
    %194 = vmatprep.subr.mxu0 0.0
    %195 = vmatpush1.msra.mxu0 0.0
    %196 = vmatprep.subr.mxu0 0.0
    %197 = vmatpush1.msra.mxu0 0.0
    %198 = vmatprep.subr.mxu0 0.0
    %199 = vmatpush1.msra.mxu0 0.0
    %200 = vmatprep.subr.mxu0 0.0
    %201 = vmatpush1.msra.mxu0 0.0
    %202 = vmatprep.subr.mxu0 0.0
    %203 = vmatpush1.msra.mxu0 0.0
    %204 = vmatprep.subr.mxu0 0.0
    %205 = vmatpush1.msra.mxu0 0.0
    %206 = vmatprep.subr.mxu0 0.0
    %207 = vmatpush1.msra.mxu0 0.0
    %208 = vmatprep.subr.mxu0 0.0
    %209 = vmatpush1.msra.mxu0 0.0
    %210 = vmatprep.subr.mxu0 0.0
    %211 = vmatpush1.msra.mxu0 0.0
    %212 = vmatprep.subr.mxu0 0.0
    %213 = vmatpush1.msra.mxu0 0.0
    %214 = vmatprep.subr.mxu0 0.0
    %215 = vmatpush1.msra.mxu0 0.0
    %216 = vmatprep.subr.mxu0 0.0
    %217 = vmatpush1.msra.mxu0 0.0
    %218 = vmatprep.subr.mxu0 0.0
    %219 = vmatpush1.msra.mxu0 0.0
    %220 = vmatprep.subr.mxu0 0.0
    %221 = vmatpush1.msra.mxu0 0.0
    %222 = vmatprep.subr.mxu0 0.0
    %223 = vmatpush1.msra.mxu0 0.0
    %224 = vmatprep.mubr.f32.mxu0 0.0
    %225 = vmatmul.mubr.f32.gmra.mrb[0].mxu0 %v66
    %v226 = vpop.f32.mrb[0].mxu0
    %v227 = vadd.f32 %v143, %v226
    %v228 = vpop.f32.mrb[0].mxu0
    %v229 = vadd.f32 %v147, %v228
    %230 = vmatprep.mubr.f32.mxu0 0.0
    %231 = vmatmul.mubr.f32.gmra.mrb[0].mxu0 %v67
    %v232 = vpop.f32.mrb[0].mxu0
    %v233 = vadd.f32 %v143, %v232
    %v234 = vpop.f32.mrb[0].mxu0
    %v235 = vadd.f32 %v147, %v234
    %236 = vmatprep.mubr.f32.mxu0 0.0
    %237 = vmatmul.mubr.f32.gmra.mrb[0].mxu0 %v68
    %v238 = vpop.f32.mrb[0].mxu0
    %v239 = vadd.f32 %v143, %v238
    %v240 = vpop.f32.mrb[0].mxu0
    %v241 = vadd.f32 %v147, %v240
    %242 = vmatprep.mubr.f32.mxu0 0.0
    %243 = vmatmul.mubr.f32.gmra.mrb[0].mxu0 %v69
    %v244 = vpop.f32.mrb[0].mxu0
    %v245 = vadd.f32 %v143, %v244
    %v246 = vpop.f32.mrb[0].mxu0
    %v247 = vadd.f32 %v147, %v246
    %248 = vmatprep.mubr.f32.mxu0 0.0
    %249 = vmatmul.mubr.f32.gmra.mrb[0].mxu0 %v70
    %v250 = vpop.f32.mrb[0].mxu0
    %v251 = vadd.f32 %v143, %v250
    %v252 = vpop.f32.mrb[0].mxu0
    %v253 = vadd.f32 %v147, %v252
    %254 = vmatprep.mubr.f32.mxu0 0.0
    %255 = vmatmul.mubr.f32.gmra.mrb[0].mxu0 %v71
    %v256 = vpop.f32.mrb[0].mxu0
    %v257 = vadd.f32 %v143, %v256
    %v258 = vpop.f32.mrb[0].mxu0
    %v259 = vadd.f32 %v147, %v258
    %260 = vmatprep.mubr.f32.mxu0 0.0
    %261 = vmatmul.mubr.f32.gmra.mrb[0].mxu0 %v72
    %v262 = vpop.f32.mrb[0].mxu0
    %v263 = vadd.f32 %v143, %v262
    %v264 = vpop.f32.mrb[0].mxu0
    %v265 = vadd.f32 %v147, %v264
    %266 = vmatprep.mubr.f32.mxu0 0.0
    %267 = vmatmul.mubr.f32.gmra.mrb[0].mxu0 %v73
    %v268 = vpop.f32.mrb[0].mxu0
    %v269 = vadd.f32 %v143, %v268
    %v270 = vpop.f32.mrb[0].mxu0
    %v271 = vadd.f32 %v147, %v270
    %272 = vdwg.mxu0
    %273 = vmatprep.subr.mxu0 %v77
    %274 = vmatpush1.msra.mxu0 %v76
    %275 = vmatprep.subr.mxu0 %v81
    %276 = vmatpush1.msra.mxu0 %v80
    %277 = vmatprep.subr.mxu0 %v85
    %278 = vmatpush1.msra.mxu0 %v84
    %279 = vmatprep.subr.mxu0 %v89
    %280 = vmatpush1.msra.mxu0 %v88
    %281 = vmatprep.subr.mxu0 %v93
    %282 = vmatpush1.msra.mxu0 %v92
    %283 = vmatprep.subr.mxu0 %v97
    %284 = vmatpush1.msra.mxu0 %v96
    %285 = vmatprep.subr.mxu0 %v101
    %286 = vmatpush1.msra.mxu0 %v100
    %287 = vmatprep.subr.mxu0 %v105
    %288 = vmatpush1.msra.mxu0 %v104
    %289 = vmatprep.subr.mxu0 %v109
    %290 = vmatpush1.msra.mxu0 %v108
    %291 = vmatprep.subr.mxu0 %v113
    %292 = vmatpush1.msra.mxu0 %v112
    %293 = vmatprep.subr.mxu0 %v117
    %294 = vmatpush1.msra.mxu0 %v116
    %295 = vmatprep.subr.mxu0 %v121
    %296 = vmatpush1.msra.mxu0 %v120
    %297 = vmatprep.subr.mxu0 %v125
    %298 = vmatpush1.msra.mxu0 %v124
    %299 = vmatprep.subr.mxu0 %v129
    %300 = vmatpush1.msra.mxu0 %v128
    %301 = vmatprep.subr.mxu0 %v133
    %302 = vmatpush1.msra.mxu0 %v132
    %303 = vmatprep.subr.mxu0 %v137
    %304 = vmatpush1.msra.mxu0 %v136
    %305 = vmatprep.subr.mxu0 0.0
    %306 = vmatpush1.msra.mxu0 0.0
    %307 = vmatprep.subr.mxu0 0.0
    %308 = vmatpush1.msra.mxu0 0.0
    %309 = vmatprep.subr.mxu0 0.0
    %310 = vmatpush1.msra.mxu0 0.0
    %311 = vmatprep.subr.mxu0 0.0
    %312 = vmatpush1.msra.mxu0 0.0
    %313 = vmatprep.subr.mxu0 0.0
    %314 = vmatpush1.msra.mxu0 0.0
    %315 = vmatprep.subr.mxu0 0.0
    %316 = vmatpush1.msra.mxu0 0.0
    %317 = vmatprep.subr.mxu0 0.0
    %318 = vmatpush1.msra.mxu0 0.0
    %319 = vmatprep.subr.mxu0 0.0
    %320 = vmatpush1.msra.mxu0 0.0
    %321 = vmatprep.subr.mxu0 0.0
    %322 = vmatpush1.msra.mxu0 0.0
    %323 = vmatprep.subr.mxu0 0.0
    %324 = vmatpush1.msra.mxu0 0.0
    %325 = vmatprep.subr.mxu0 0.0
    %326 = vmatpush1.msra.mxu0 0.0
    %327 = vmatprep.subr.mxu0 0.0
    %328 = vmatpush1.msra.mxu0 0.0
    %329 = vmatprep.subr.mxu0 0.0
    %330 = vmatpush1.msra.mxu0 0.0
    %331 = vmatprep.subr.mxu0 0.0
    %332 = vmatpush1.msra.mxu0 0.0
    %333 = vmatprep.subr.mxu0 0.0
    %334 = vmatpush1.msra.mxu0 0.0
    %335 = vmatprep.subr.mxu0 0.0
    %336 = vmatpush1.msra.mxu0 0.0
    %337 = vmatprep.mubr.f32.mxu0 0.0
    %338 = vmatmul.mubr.f32.gmra.mrb[0].mxu0 %v66
    %v339 = vpop.f32.mrb[0].mxu0
    %v340 = vadd.f32 %v151, %v339
    %v341 = vpop.f32.mrb[0].mxu0
    %v342 = vadd.f32 %v155, %v341
    %343 = vmatprep.mubr.f32.mxu0 0.0
    %344 = vmatmul.mubr.f32.gmra.mrb[0].mxu0 %v67
    %v345 = vpop.f32.mrb[0].mxu0
    %v346 = vadd.f32 %v151, %v345
    %v347 = vpop.f32.mrb[0].mxu0
    %v348 = vadd.f32 %v155, %v347
    %349 = vmatprep.mubr.f32.mxu0 0.0
    %350 = vmatmul.mubr.f32.gmra.mrb[0].mxu0 %v68
    %v351 = vpop.f32.mrb[0].mxu0
    %v352 = vadd.f32 %v151, %v351
    %v353 = vpop.f32.mrb[0].mxu0
    %v354 = vadd.f32 %v155, %v353
    %355 = vmatprep.mubr.f32.mxu0 0.0
    %356 = vmatmul.mubr.f32.gmra.mrb[0].mxu0 %v69
    %v357 = vpop.f32.mrb[0].mxu0
    %v358 = vadd.f32 %v151, %v357
    %v359 = vpop.f32.mrb[0].mxu0
    %v360 = vadd.f32 %v155, %v359
    %361 = vmatprep.mubr.f32.mxu0 0.0
    %362 = vmatmul.mubr.f32.gmra.mrb[0].mxu0 %v70
    %v363 = vpop.f32.mrb[0].mxu0
    %v364 = vadd.f32 %v151, %v363
    %v365 = vpop.f32.mrb[0].mxu0
    %v366 = vadd.f32 %v155, %v365
    %367 = vmatprep.mubr.f32.mxu0 0.0
    %368 = vmatmul.mubr.f32.gmra.mrb[0].mxu0 %v71
    %v369 = vpop.f32.mrb[0].mxu0
    %v370 = vadd.f32 %v151, %v369
    %v371 = vpop.f32.mrb[0].mxu0
    %v372 = vadd.f32 %v155, %v371
    %373 = vmatprep.mubr.f32.mxu0 0.0
    %374 = vmatmul.mubr.f32.gmra.mrb[0].mxu0 %v72
    %v375 = vpop.f32.mrb[0].mxu0
    %v376 = vadd.f32 %v151, %v375
    %v377 = vpop.f32.mrb[0].mxu0
    %v378 = vadd.f32 %v155, %v377
    %379 = vmatprep.mubr.f32.mxu0 0.0
    %380 = vmatmul.mubr.f32.gmra.mrb[0].mxu0 %v73
    %v381 = vpop.f32.mrb[0].mxu0
    %v382 = vadd.f32 %v151, %v381
    %v383 = vpop.f32.mrb[0].mxu0
    %v384 = vadd.f32 %v155, %v383
    %385 = vdwg.mxu0
    %386 = vst [vmem:[#allocation2] sm:$0xff] %v227
    %387 = vst [vmem:[#allocation2 + $0x8] sm:$0xff] %v229
    %388 = vst [vmem:[#allocation2 + $0x10] sm:$0xff] %v340
    %389 = vst [vmem:[#allocation2 + $0x18] sm:$0xff] %v342
    %390 = vst [vmem:[#allocation2 + $0x20] sm:$0xff] %v233
    %391 = vst [vmem:[#allocation2 + $0x28] sm:$0xff] %v235
    %392 = vst [vmem:[#allocation2 + $0x30] sm:$0xff] %v346
    %393 = vst [vmem:[#allocation2 + $0x38] sm:$0xff] %v348
    %394 = vst [vmem:[#allocation2 + $0x40] sm:$0xff] %v239
    %395 = vst [vmem:[#allocation2 + $0x48] sm:$0xff] %v241
    %396 = vst [vmem:[#allocation2 + $0x50] sm:$0xff] %v352
    %397 = vst [vmem:[#allocation2 + $0x58] sm:$0xff] %v354
    %398 = vst [vmem:[#allocation2 + $0x60] sm:$0xff] %v245
    %399 = vst [vmem:[#allocation2 + $0x68] sm:$0xff] %v247
    %400 = vst [vmem:[#allocation2 + $0x70] sm:$0xff] %v358
    %401 = vst [vmem:[#allocation2 + $0x78] sm:$0xff] %v360
    %402 = vst [vmem:[#allocation2 + $0x80] sm:$0xff] %v251
    %403 = vst [vmem:[#allocation2 + $0x88] sm:$0xff] %v253
    %404 = vst [vmem:[#allocation2 + $0x90] sm:$0xff] %v364
    %405 = vst [vmem:[#allocation2 + $0x98] sm:$0xff] %v366
    %406 = vst [vmem:[#allocation2 + $0xa0] sm:$0xff] %v257
    %407 = vst [vmem:[#allocation2 + $0xa8] sm:$0xff] %v259
    %408 = vst [vmem:[#allocation2 + $0xb0] sm:$0xff] %v370
    %409 = vst [vmem:[#allocation2 + $0xb8] sm:$0xff] %v372
    %410 = vst [vmem:[#allocation2 + $0xc0] sm:$0xff] %v263
    %411 = vst [vmem:[#allocation2 + $0xc8] sm:$0xff] %v265
    %412 = vst [vmem:[#allocation2 + $0xd0] sm:$0xff] %v376
    %413 = vst [vmem:[#allocation2 + $0xd8] sm:$0xff] %v378
    %414 = vst [vmem:[#allocation2 + $0xe0] sm:$0xff] %v269
    %415 = vst [vmem:[#allocation2 + $0xe8] sm:$0xff] %v271
    %416 = vst [vmem:[#allocation2 + $0xf0] sm:$0xff] %v382
    %417 = vst [vmem:[#allocation2 + $0xf8] sm:$0xff] %v384
    %v418 = vld [vmem:[#allocation8] sm:$0xff]
    %v419 = vld [vmem:[#allocation8 + $0x8] sm:$0xff]
    %v420 = vld [vmem:[#allocation8 + $0x10] sm:$0xff]
    %v421 = vld [vmem:[#allocation8 + $0x18] sm:$0xff]
    %v422 = vld [vmem:[#allocation8 + $0x20] sm:$0xff]
    %v423 = vld [vmem:[#allocation8 + $0x28] sm:$0xff]
    %v424 = vld [vmem:[#allocation8 + $0x30] sm:$0xff]
    %v425 = vld [vmem:[#allocation8 + $0x38] sm:$0xff]
    %v426 = vld [vmem:[#allocation8 + $0x40] sm:$0xff]
    %v427 = vld [vmem:[#allocation8 + $0x48] sm:$0xff]
    %v428 = vld [vmem:[#allocation8 + $0x50] sm:$0xff]
    %v429 = vld [vmem:[#allocation8 + $0x58] sm:$0xff]
    %v430 = vld [vmem:[#allocation8 + $0x60] sm:$0xff]
    %v431 = vld [vmem:[#allocation8 + $0x68] sm:$0xff]
    %v432 = vld [vmem:[#allocation8 + $0x70] sm:$0xff]
    %v433 = vld [vmem:[#allocation8 + $0x78] sm:$0xff]
    %v434 = vld [vmem:[#allocation8 + $0x80] sm:$0xff]
    %v435 = vld [vmem:[#allocation8 + $0x88] sm:$0xff]
    %v436 = vld [vmem:[#allocation8 + $0x90] sm:$0xff]
    %v437 = vld [vmem:[#allocation8 + $0x98] sm:$0xff]
    %v438 = vld [vmem:[#allocation8 + $0xa0] sm:$0xff]
    %v439 = vld [vmem:[#allocation8 + $0xa8] sm:$0xff]
    %v440 = vld [vmem:[#allocation8 + $0xb0] sm:$0xff]
    %v441 = vld [vmem:[#allocation8 + $0xb8] sm:$0xff]
    %v442 = vld [vmem:[#allocation8 + $0xc0] sm:$0xff]
    %v443 = vld [vmem:[#allocation8 + $0xc8] sm:$0xff]
    %v444 = vld [vmem:[#allocation8 + $0xd0] sm:$0xff]
    %v445 = vld [vmem:[#allocation8 + $0xd8] sm:$0xff]
    %v446 = vld [vmem:[#allocation8 + $0xe0] sm:$0xff]
    %v447 = vld [vmem:[#allocation8 + $0xe8] sm:$0xff]
    %v448 = vld [vmem:[#allocation8 + $0xf0] sm:$0xff]
    %v449 = vld [vmem:[#allocation8 + $0xf8] sm:$0xff]
    %v450 = vld [vmem:[#allocation8 + $0x100] sm:$0xff]
    %v451 = vld [vmem:[#allocation8 + $0x108] sm:$0xff]
    %v452 = vld [vmem:[#allocation8 + $0x110] sm:$0xff]
    %v453 = vld [vmem:[#allocation8 + $0x118] sm:$0xff]
    %v454 = vld [vmem:[#allocation8 + $0x120] sm:$0xff]
    %v455 = vld [vmem:[#allocation8 + $0x128] sm:$0xff]
    %v456 = vld [vmem:[#allocation8 + $0x130] sm:$0xff]
    %v457 = vld [vmem:[#allocation8 + $0x138] sm:$0xff]
    %v458 = vld [vmem:[#allocation8 + $0x140] sm:$0xff]
    %v459 = vld [vmem:[#allocation8 + $0x148] sm:$0xff]
    %v460 = vld [vmem:[#allocation8 + $0x150] sm:$0xff]
    %v461 = vld [vmem:[#allocation8 + $0x158] sm:$0xff]
    %v462 = vld [vmem:[#allocation8 + $0x160] sm:$0xff]
    %v463 = vld [vmem:[#allocation8 + $0x168] sm:$0xff]
    %v464 = vld [vmem:[#allocation8 + $0x170] sm:$0xff]
    %v465 = vld [vmem:[#allocation8 + $0x178] sm:$0xff]
    %v466 = vld [vmem:[#allocation8 + $0x180] sm:$0xff]
    %v467 = vld [vmem:[#allocation8 + $0x188] sm:$0xff]
    %v468 = vld [vmem:[#allocation8 + $0x190] sm:$0xff]
    %v469 = vld [vmem:[#allocation8 + $0x198] sm:$0xff]
    %v470 = vld [vmem:[#allocation8 + $0x1a0] sm:$0xff]
    %v471 = vld [vmem:[#allocation8 + $0x1a8] sm:$0xff]
    %v472 = vld [vmem:[#allocation8 + $0x1b0] sm:$0xff]
    %v473 = vld [vmem:[#allocation8 + $0x1b8] sm:$0xff]
    %v474 = vld [vmem:[#allocation8 + $0x1c0] sm:$0xff]
    %v475 = vld [vmem:[#allocation8 + $0x1c8] sm:$0xff]
    %v476 = vld [vmem:[#allocation8 + $0x1d0] sm:$0xff]
    %v477 = vld [vmem:[#allocation8 + $0x1d8] sm:$0xff]
    %v478 = vld [vmem:[#allocation8 + $0x1e0] sm:$0xff]
    %v479 = vld [vmem:[#allocation8 + $0x1e8] sm:$0xff]
    %v480 = vld [vmem:[#allocation8 + $0x1f0] sm:$0xff]
    %v481 = vld [vmem:[#allocation8 + $0x1f8] sm:$0xff]
    %v482 = vld [vmem:[#allocation2] sm:$0xff]
    %v483 = vld [vmem:[#allocation2 + $0x8] sm:$0xff]
    %v484 = vld [vmem:[#allocation2 + $0x10] sm:$0xff]
    %v485 = vld [vmem:[#allocation2 + $0x18] sm:$0xff]
    %486 = vmatprep.subr.mxu0 %v419
    %487 = vmatpush1.msra.mxu0 %v418
    %488 = vmatprep.subr.mxu0 %v423
    %489 = vmatpush1.msra.mxu0 %v422
    %490 = vmatprep.subr.mxu0 %v427
    %491 = vmatpush1.msra.mxu0 %v426
    %492 = vmatprep.subr.mxu0 %v431
    %493 = vmatpush1.msra.mxu0 %v430
    %494 = vmatprep.subr.mxu0 %v435
    %495 = vmatpush1.msra.mxu0 %v434
    %496 = vmatprep.subr.mxu0 %v439
    %497 = vmatpush1.msra.mxu0 %v438
    %498 = vmatprep.subr.mxu0 %v443
    %499 = vmatpush1.msra.mxu0 %v442
    %500 = vmatprep.subr.mxu0 %v447
    %501 = vmatpush1.msra.mxu0 %v446
    %502 = vmatprep.subr.mxu0 %v451
    %503 = vmatpush1.msra.mxu0 %v450
    %504 = vmatprep.subr.mxu0 %v455
    %505 = vmatpush1.msra.mxu0 %v454
    %506 = vmatprep.subr.mxu0 %v459
    %507 = vmatpush1.msra.mxu0 %v458
    %508 = vmatprep.subr.mxu0 %v463
    %509 = vmatpush1.msra.mxu0 %v462
    %510 = vmatprep.subr.mxu0 %v467
    %511 = vmatpush1.msra.mxu0 %v466
    %512 = vmatprep.subr.mxu0 %v471
    %513 = vmatpush1.msra.mxu0 %v470
    %514 = vmatprep.subr.mxu0 %v475
    %515 = vmatpush1.msra.mxu0 %v474
    %516 = vmatprep.subr.mxu0 %v479
    %517 = vmatpush1.msra.mxu0 %v478
    %518 = vmatprep.subr.mxu0 0.0
    %519 = vmatpush1.msra.mxu0 0.0
    %520 = vmatprep.subr.mxu0 0.0
    %521 = vmatpush1.msra.mxu0 0.0
    %522 = vmatprep.subr.mxu0 0.0
    %523 = vmatpush1.msra.mxu0 0.0
    %524 = vmatprep.subr.mxu0 0.0
    %525 = vmatpush1.msra.mxu0 0.0
    %526 = vmatprep.subr.mxu0 0.0
    %527 = vmatpush1.msra.mxu0 0.0
    %528 = vmatprep.subr.mxu0 0.0
    %529 = vmatpush1.msra.mxu0 0.0
    %530 = vmatprep.subr.mxu0 0.0
    %531 = vmatpush1.msra.mxu0 0.0
    %532 = vmatprep.subr.mxu0 0.0
    %533 = vmatpush1.msra.mxu0 0.0
    %534 = vmatprep.subr.mxu0 0.0
    %535 = vmatpush1.msra.mxu0 0.0
    %536 = vmatprep.subr.mxu0 0.0
    %537 = vmatpush1.msra.mxu0 0.0
    %538 = vmatprep.subr.mxu0 0.0
    %539 = vmatpush1.msra.mxu0 0.0
    %540 = vmatprep.subr.mxu0 0.0
    %541 = vmatpush1.msra.mxu0 0.0
    %542 = vmatprep.subr.mxu0 0.0
    %543 = vmatpush1.msra.mxu0 0.0
    %544 = vmatprep.subr.mxu0 0.0
    %545 = vmatpush1.msra.mxu0 0.0
    %546 = vmatprep.subr.mxu0 0.0
    %547 = vmatpush1.msra.mxu0 0.0
    %548 = vmatprep.subr.mxu0 0.0
    %549 = vmatpush1.msra.mxu0 0.0
    %550 = vmatprep.mubr.f32.mxu0 0.0
    %551 = vmatmul.mubr.f32.gmra.mrb[0].mxu0 0.0
    %v552 = vpop.f32.mrb[0].mxu0
    %v553 = vadd.f32 %v482, %v552
    %v554 = vpop.f32.mrb[0].mxu0
    %v555 = vadd.f32 %v483, %v554
    %556 = vdwg.mxu0
    %557 = vmatprep.subr.mxu0 %v421
    %558 = vmatpush1.msra.mxu0 %v420
    %559 = vmatprep.subr.mxu0 %v425
    %560 = vmatpush1.msra.mxu0 %v424
    %561 = vmatprep.subr.mxu0 %v429
    %562 = vmatpush1.msra.mxu0 %v428
    %563 = vmatprep.subr.mxu0 %v433
    %564 = vmatpush1.msra.mxu0 %v432
    %565 = vmatprep.subr.mxu0 %v437
    %566 = vmatpush1.msra.mxu0 %v436
    %567 = vmatprep.subr.mxu0 %v441
    %568 = vmatpush1.msra.mxu0 %v440
    %569 = vmatprep.subr.mxu0 %v445
    %570 = vmatpush1.msra.mxu0 %v444
    %571 = vmatprep.subr.mxu0 %v449
    %572 = vmatpush1.msra.mxu0 %v448
    %573 = vmatprep.subr.mxu0 %v453
    %574 = vmatpush1.msra.mxu0 %v452
    %575 = vmatprep.subr.mxu0 %v457
    %576 = vmatpush1.msra.mxu0 %v456
    %577 = vmatprep.subr.mxu0 %v461
    %578 = vmatpush1.msra.mxu0 %v460
    %579 = vmatprep.subr.mxu0 %v465
    %580 = vmatpush1.msra.mxu0 %v464
    %581 = vmatprep.subr.mxu0 %v469
    %582 = vmatpush1.msra.mxu0 %v468
    %583 = vmatprep.subr.mxu0 %v473
    %584 = vmatpush1.msra.mxu0 %v472
    %585 = vmatprep.subr.mxu0 %v477
    %586 = vmatpush1.msra.mxu0 %v476
    %587 = vmatprep.subr.mxu0 %v481
    %588 = vmatpush1.msra.mxu0 %v480
    %589 = vmatprep.subr.mxu0 0.0
    %590 = vmatpush1.msra.mxu0 0.0
    %591 = vmatprep.subr.mxu0 0.0
    %592 = vmatpush1.msra.mxu0 0.0
    %593 = vmatprep.subr.mxu0 0.0
    %594 = vmatpush1.msra.mxu0 0.0
    %595 = vmatprep.subr.mxu0 0.0
    %596 = vmatpush1.msra.mxu0 0.0
    %597 = vmatprep.subr.mxu0 0.0
    %598 = vmatpush1.msra.mxu0 0.0
    %599 = vmatprep.subr.mxu0 0.0
    %600 = vmatpush1.msra.mxu0 0.0
    %601 = vmatprep.subr.mxu0 0.0
    %602 = vmatpush1.msra.mxu0 0.0
    %603 = vmatprep.subr.mxu0 0.0
    %604 = vmatpush1.msra.mxu0 0.0
    %605 = vmatprep.subr.mxu0 0.0
    %606 = vmatpush1.msra.mxu0 0.0
    %607 = vmatprep.subr.mxu0 0.0
    %608 = vmatpush1.msra.mxu0 0.0
    %609 = vmatprep.subr.mxu0 0.0
    %610 = vmatpush1.msra.mxu0 0.0
    %611 = vmatprep.subr.mxu0 0.0
    %612 = vmatpush1.msra.mxu0 0.0
    %613 = vmatprep.subr.mxu0 0.0
    %614 = vmatpush1.msra.mxu0 0.0
    %615 = vmatprep.subr.mxu0 0.0
    %616 = vmatpush1.msra.mxu0 0.0
    %617 = vmatprep.subr.mxu0 0.0
    %618 = vmatpush1.msra.mxu0 0.0
    %619 = vmatprep.subr.mxu0 0.0
    %620 = vmatpush1.msra.mxu0 0.0
    %621 = vmatprep.mubr.f32.mxu0 0.0
    %622 = vmatmul.mubr.f32.gmra.mrb[0].mxu0 0.0
    %v623 = vpop.f32.mrb[0].mxu0
    %v624 = vadd.f32 %v484, %v623
    %v625 = vpop.f32.mrb[0].mxu0
    %v626 = vadd.f32 %v485, %v625
    %627 = vdwg.mxu0
    %v628 = vmul.f32 %v553, 0.5
    %v629 = vmul.f32 %v555, 0.5
    %v630 = vmul.f32 %v624, 0.5
    %v631 = vtanh.pop %v628
    %v632 = vtanh.pop %v629
    %v633 = vtanh.pop %v630
    %v634 = vmul.f32 %v631, 0.5
    %v635 = vmul.f32 %v632, 0.5
    %v636 = vmul.f32 %v633, 0.5
    %v637 = vadd.f32 %v634, 0.5
    %v638 = vadd.f32 %v635, 0.5
    %v639 = vadd.f32 %v636, 0.5
    %v640 = vtanh.pop %v626
    %v641 = vmul.f32 %v638, 0.0
    %v642 = vmul.f32 %v637, %v640
    %v643 = vadd.f32 %v641, %v642
    %v644 = vtanh.pop %v643
    %v645 = vmul.f32 %v639, %v644
    %v646 = vld [vmem:[#allocation2 + $0x20] sm:$0xff]
    %v647 = vld [vmem:[#allocation2 + $0x28] sm:$0xff]
    %v648 = vld [vmem:[#allocation2 + $0x30] sm:$0xff]
    %v649 = vld [vmem:[#allocation2 + $0x38] sm:$0xff]
    %650 = vmatprep.subr.mxu0 %v419
    %651 = vmatpush1.msra.mxu0 %v418
    %652 = vmatprep.subr.mxu0 %v423
    %653 = vmatpush1.msra.mxu0 %v422
    %654 = vmatprep.subr.mxu0 %v427
    %655 = vmatpush1.msra.mxu0 %v426
    %656 = vmatprep.subr.mxu0 %v431
    %657 = vmatpush1.msra.mxu0 %v430
    %658 = vmatprep.subr.mxu0 %v435
    %659 = vmatpush1.msra.mxu0 %v434
    %660 = vmatprep.subr.mxu0 %v439
    %661 = vmatpush1.msra.mxu0 %v438
    %662 = vmatprep.subr.mxu0 %v443
    %663 = vmatpush1.msra.mxu0 %v442
    %664 = vmatprep.subr.mxu0 %v447
    %665 = vmatpush1.msra.mxu0 %v446
    %666 = vmatprep.subr.mxu0 %v451
    %667 = vmatpush1.msra.mxu0 %v450
    %668 = vmatprep.subr.mxu0 %v455
    %669 = vmatpush1.msra.mxu0 %v454
    %670 = vmatprep.subr.mxu0 %v459
    %671 = vmatpush1.msra.mxu0 %v458
    %672 = vmatprep.subr.mxu0 %v463
    %673 = vmatpush1.msra.mxu0 %v462
    %674 = vmatprep.subr.mxu0 %v467
    %675 = vmatpush1.msra.mxu0 %v466
    %676 = vmatprep.subr.mxu0 %v471
    %677 = vmatpush1.msra.mxu0 %v470
    %678 = vmatprep.subr.mxu0 %v475
    %679 = vmatpush1.msra.mxu0 %v474
    %680 = vmatprep.subr.mxu0 %v479
    %681 = vmatpush1.msra.mxu0 %v478
    %682 = vmatprep.subr.mxu0 0.0
    %683 = vmatpush1.msra.mxu0 0.0
    %684 = vmatprep.subr.mxu0 0.0
    %685 = vmatpush1.msra.mxu0 0.0
    %686 = vmatprep.subr.mxu0 0.0
    %687 = vmatpush1.msra.mxu0 0.0
    %688 = vmatprep.subr.mxu0 0.0
    %689 = vmatpush1.msra.mxu0 0.0
    %690 = vmatprep.subr.mxu0 0.0
    %691 = vmatpush1.msra.mxu0 0.0
    %692 = vmatprep.subr.mxu0 0.0
    %693 = vmatpush1.msra.mxu0 0.0
    %694 = vmatprep.subr.mxu0 0.0
    %695 = vmatpush1.msra.mxu0 0.0
    %696 = vmatprep.subr.mxu0 0.0
    %697 = vmatpush1.msra.mxu0 0.0
    %698 = vmatprep.subr.mxu0 0.0
    %699 = vmatpush1.msra.mxu0 0.0
    %700 = vmatprep.subr.mxu0 0.0
    %701 = vmatpush1.msra.mxu0 0.0
    %702 = vmatprep.subr.mxu0 0.0
    %703 = vmatpush1.msra.mxu0 0.0
    %704 = vmatprep.subr.mxu0 0.0
    %705 = vmatpush1.msra.mxu0 0.0
    %706 = vmatprep.subr.mxu0 0.0
    %707 = vmatpush1.msra.mxu0 0.0
    %708 = vmatprep.subr.mxu0 0.0
    %709 = vmatpush1.msra.mxu0 0.0
    %710 = vmatprep.subr.mxu0 0.0
    %711 = vmatpush1.msra.mxu0 0.0
    %712 = vmatprep.subr.mxu0 0.0
    %713 = vmatpush1.msra.mxu0 0.0
    %714 = vmatprep.mubr.f32.mxu0 0.0
    %715 = vmatmul.mubr.f32.gmra.mrb[0].mxu0 %v645
    %v716 = vpop.f32.mrb[0].mxu0
    %v717 = vadd.f32 %v646, %v716
    %v718 = vpop.f32.mrb[0].mxu0
    %v719 = vadd.f32 %v647, %v718
    %720 = vdwg.mxu0
    %721 = vmatprep.subr.mxu0 %v421
    %722 = vmatpush1.msra.mxu0 %v420
    %723 = vmatprep.subr.mxu0 %v425
    %724 = vmatpush1.msra.mxu0 %v424
    %725 = vmatprep.subr.mxu0 %v429
    %726 = vmatpush1.msra.mxu0 %v428
    %727 = vmatprep.subr.mxu0 %v433
    %728 = vmatpush1.msra.mxu0 %v432
    %729 = vmatprep.subr.mxu0 %v437
    %730 = vmatpush1.msra.mxu0 %v436
    %731 = vmatprep.subr.mxu0 %v441
    %732 = vmatpush1.msra.mxu0 %v440
    %733 = vmatprep.subr.mxu0 %v445
    %734 = vmatpush1.msra.mxu0 %v444
    %735 = vmatprep.subr.mxu0 %v449
    %736 = vmatpush1.msra.mxu0 %v448
    %737 = vmatprep.subr.mxu0 %v453
    %738 = vmatpush1.msra.mxu0 %v452
    %739 = vmatprep.subr.mxu0 %v457
    %740 = vmatpush1.msra.mxu0 %v456
    %741 = vmatprep.subr.mxu0 %v461
    %742 = vmatpush1.msra.mxu0 %v460
    %743 = vmatprep.subr.mxu0 %v465
    %744 = vmatpush1.msra.mxu0 %v464
    %745 = vmatprep.subr.mxu0 %v469
    %746 = vmatpush1.msra.mxu0 %v468
    %747 = vmatprep.subr.mxu0 %v473
    %748 = vmatpush1.msra.mxu0 %v472
    %749 = vmatprep.subr.mxu0 %v477
    %750 = vmatpush1.msra.mxu0 %v476
    %751 = vmatprep.subr.mxu0 %v481
    %752 = vmatpush1.msra.mxu0 %v480
    %753 = vmatprep.subr.mxu0 0.0
    %754 = vmatpush1.msra.mxu0 0.0
    %755 = vmatprep.subr.mxu0 0.0
    %756 = vmatpush1.msra.mxu0 0.0
    %757 = vmatprep.subr.mxu0 0.0
    %758 = vmatpush1.msra.mxu0 0.0
    %759 = vmatprep.subr.mxu0 0.0
    %760 = vmatpush1.msra.mxu0 0.0
    %761 = vmatprep.subr.mxu0 0.0
    %762 = vmatpush1.msra.mxu0 0.0
    %763 = vmatprep.subr.mxu0 0.0
    %764 = vmatpush1.msra.mxu0 0.0
    %765 = vmatprep.subr.mxu0 0.0
    %766 = vmatpush1.msra.mxu0 0.0
    %767 = vmatprep.subr.mxu0 0.0
    %768 = vmatpush1.msra.mxu0 0.0
    %769 = vmatprep.subr.mxu0 0.0
    %770 = vmatpush1.msra.mxu0 0.0
    %771 = vmatprep.subr.mxu0 0.0
    %772 = vmatpush1.msra.mxu0 0.0
    %773 = vmatprep.subr.mxu0 0.0
    %774 = vmatpush1.msra.mxu0 0.0
    %775 = vmatprep.subr.mxu0 0.0
    %776 = vmatpush1.msra.mxu0 0.0
    %777 = vmatprep.subr.mxu0 0.0
    %778 = vmatpush1.msra.mxu0 0.0
    %779 = vmatprep.subr.mxu0 0.0
    %780 = vmatpush1.msra.mxu0 0.0
    %781 = vmatprep.subr.mxu0 0.0
    %782 = vmatpush1.msra.mxu0 0.0
    %783 = vmatprep.subr.mxu0 0.0
    %784 = vmatpush1.msra.mxu0 0.0
    %785 = vmatprep.mubr.f32.mxu0 0.0
    %786 = vmatmul.mubr.f32.gmra.mrb[0].mxu0 %v645
    %v787 = vpop.f32.mrb[0].mxu0
    %v788 = vadd.f32 %v648, %v787
    %v789 = vpop.f32.mrb[0].mxu0
    %v790 = vadd.f32 %v649, %v789
    %791 = vdwg.mxu0
    %v792 = vmul.f32 %v717, 0.5
    %v793 = vmul.f32 %v719, 0.5
    %v794 = vmul.f32 %v788, 0.5
    %v795 = vtanh.pop %v792
    %v796 = vtanh.pop %v793
    %v797 = vtanh.pop %v794
    %v798 = vmul.f32 %v795, 0.5
    %v799 = vmul.f32 %v796, 0.5
    %v800 = vmul.f32 %v797, 0.5
    %v801 = vadd.f32 %v798, 0.5
    %v802 = vadd.f32 %v799, 0.5
    %v803 = vadd.f32 %v800, 0.5
    %v804 = vtanh.pop %v790
    %v805 = vmul.f32 %v802, %v643
    %v806 = vmul.f32 %v801, %v804
    %v807 = vadd.f32 %v805, %v806
    %v808 = vtanh.pop %v807
    %v809 = vmul.f32 %v803, %v808
    %v810 = vld [vmem:[#allocation2 + $0x40] sm:$0xff]
    %v811 = vld [vmem:[#allocation2 + $0x48] sm:$0xff]
    %v812 = vld [vmem:[#allocation2 + $0x50] sm:$0xff]
    %v813 = vld [vmem:[#allocation2 + $0x58] sm:$0xff]
    %814 = vmatprep.subr.mxu0 %v419
    %815 = vmatpush1.msra.mxu0 %v418
    %816 = vmatprep.subr.mxu0 %v423
    %817 = vmatpush1.msra.mxu0 %v422
    %818 = vmatprep.subr.mxu0 %v427
    %819 = vmatpush1.msra.mxu0 %v426
    %820 = vmatprep.subr.mxu0 %v431
    %821 = vmatpush1.msra.mxu0 %v430
    %822 = vmatprep.subr.mxu0 %v435
    %823 = vmatpush1.msra.mxu0 %v434
    %824 = vmatprep.subr.mxu0 %v439
    %825 = vmatpush1.msra.mxu0 %v438
    %826 = vmatprep.subr.mxu0 %v443
    %827 = vmatpush1.msra.mxu0 %v442
    %828 = vmatprep.subr.mxu0 %v447
    %829 = vmatpush1.msra.mxu0 %v446
    %830 = vmatprep.subr.mxu0 %v451
    %831 = vmatpush1.msra.mxu0 %v450
    %832 = vmatprep.subr.mxu0 %v455
    %833 = vmatpush1.msra.mxu0 %v454
    %834 = vmatprep.subr.mxu0 %v459
    %835 = vmatpush1.msra.mxu0 %v458
    %836 = vmatprep.subr.mxu0 %v463
    %837 = vmatpush1.msra.mxu0 %v462
    %838 = vmatprep.subr.mxu0 %v467
    %839 = vmatpush1.msra.mxu0 %v466
    %840 = vmatprep.subr.mxu0 %v471
    %841 = vmatpush1.msra.mxu0 %v470
    %842 = vmatprep.subr.mxu0 %v475
    %843 = vmatpush1.msra.mxu0 %v474
    %844 = vmatprep.subr.mxu0 %v479
    %845 = vmatpush1.msra.mxu0 %v478
    %846 = vmatprep.subr.mxu0 0.0
    %847 = vmatpush1.msra.mxu0 0.0
    %848 = vmatprep.subr.mxu0 0.0
    %849 = vmatpush1.msra.mxu0 0.0
    %850 = vmatprep.subr.mxu0 0.0
    %851 = vmatpush1.msra.mxu0 0.0
    %852 = vmatprep.subr.mxu0 0.0
    %853 = vmatpush1.msra.mxu0 0.0
    %854 = vmatprep.subr.mxu0 0.0
    %855 = vmatpush1.msra.mxu0 0.0
    %856 = vmatprep.subr.mxu0 0.0
    %857 = vmatpush1.msra.mxu0 0.0
    %858 = vmatprep.subr.mxu0 0.0
    %859 = vmatpush1.msra.mxu0 0.0
    %860 = vmatprep.subr.mxu0 0.0
    %861 = vmatpush1.msra.mxu0 0.0
    %862 = vmatprep.subr.mxu0 0.0
    %863 = vmatpush1.msra.mxu0 0.0
    %864 = vmatprep.subr.mxu0 0.0
    %865 = vmatpush1.msra.mxu0 0.0
    %866 = vmatprep.subr.mxu0 0.0
    %867 = vmatpush1.msra.mxu0 0.0
    %868 = vmatprep.subr.mxu0 0.0
    %869 = vmatpush1.msra.mxu0 0.0
    %870 = vmatprep.subr.mxu0 0.0
    %871 = vmatpush1.msra.mxu0 0.0
    %872 = vmatprep.subr.mxu0 0.0
    %873 = vmatpush1.msra.mxu0 0.0
    %874 = vmatprep.subr.mxu0 0.0
    %875 = vmatpush1.msra.mxu0 0.0
    %876 = vmatprep.subr.mxu0 0.0
    %877 = vmatpush1.msra.mxu0 0.0
    %878 = vmatprep.mubr.f32.mxu0 0.0
    %879 = vmatmul.mubr.f32.gmra.mrb[0].mxu0 %v809
    %v880 = vpop.f32.mrb[0].mxu0
    %v881 = vadd.f32 %v810, %v880
    %v882 = vpop.f32.mrb[0].mxu0
    %v883 = vadd.f32 %v811, %v882
    %884 = vdwg.mxu0
    %885 = vmatprep.subr.mxu0 %v421
    %886 = vmatpush1.msra.mxu0 %v420
    %887 = vmatprep.subr.mxu0 %v425
    %888 = vmatpush1.msra.mxu0 %v424
    %889 = vmatprep.subr.mxu0 %v429
    %890 = vmatpush1.msra.mxu0 %v428
    %891 = vmatprep.subr.mxu0 %v433
    %892 = vmatpush1.msra.mxu0 %v432
    %893 = vmatprep.subr.mxu0 %v437
    %894 = vmatpush1.msra.mxu0 %v436
    %895 = vmatprep.subr.mxu0 %v441
    %896 = vmatpush1.msra.mxu0 %v440
    %897 = vmatprep.subr.mxu0 %v445
    %898 = vmatpush1.msra.mxu0 %v444
    %899 = vmatprep.subr.mxu0 %v449
    %900 = vmatpush1.msra.mxu0 %v448
    %901 = vmatprep.subr.mxu0 %v453
    %902 = vmatpush1.msra.mxu0 %v452
    %903 = vmatprep.subr.mxu0 %v457
    %904 = vmatpush1.msra.mxu0 %v456
    %905 = vmatprep.subr.mxu0 %v461
    %906 = vmatpush1.msra.mxu0 %v460
    %907 = vmatprep.subr.mxu0 %v465
    %908 = vmatpush1.msra.mxu0 %v464
    %909 = vmatprep.subr.mxu0 %v469
    %910 = vmatpush1.msra.mxu0 %v468
    %911 = vmatprep.subr.mxu0 %v473
    %912 = vmatpush1.msra.mxu0 %v472
    %913 = vmatprep.subr.mxu0 %v477
    %914 = vmatpush1.msra.mxu0 %v476
    %915 = vmatprep.subr.mxu0 %v481
    %916 = vmatpush1.msra.mxu0 %v480
    %917 = vmatprep.subr.mxu0 0.0
    %918 = vmatpush1.msra.mxu0 0.0
    %919 = vmatprep.subr.mxu0 0.0
    %920 = vmatpush1.msra.mxu0 0.0
    %921 = vmatprep.subr.mxu0 0.0
    %922 = vmatpush1.msra.mxu0 0.0
    %923 = vmatprep.subr.mxu0 0.0
    %924 = vmatpush1.msra.mxu0 0.0
    %925 = vmatprep.subr.mxu0 0.0
    %926 = vmatpush1.msra.mxu0 0.0
    %927 = vmatprep.subr.mxu0 0.0
    %928 = vmatpush1.msra.mxu0 0.0
    %929 = vmatprep.subr.mxu0 0.0
    %930 = vmatpush1.msra.mxu0 0.0
    %931 = vmatprep.subr.mxu0 0.0
    %932 = vmatpush1.msra.mxu0 0.0
    %933 = vmatprep.subr.mxu0 0.0
    %934 = vmatpush1.msra.mxu0 0.0
    %935 = vmatprep.subr.mxu0 0.0
    %936 = vmatpush1.msra.mxu0 0.0
    %937 = vmatprep.subr.mxu0 0.0
    %938 = vmatpush1.msra.mxu0 0.0
    %939 = vmatprep.subr.mxu0 0.0
    %940 = vmatpush1.msra.mxu0 0.0
    %941 = vmatprep.subr.mxu0 0.0
    %942 = vmatpush1.msra.mxu0 0.0
    %943 = vmatprep.subr.mxu0 0.0
    %944 = vmatpush1.msra.mxu0 0.0
    %945 = vmatprep.subr.mxu0 0.0
    %946 = vmatpush1.msra.mxu0 0.0
    %947 = vmatprep.subr.mxu0 0.0
    %948 = vmatpush1.msra.mxu0 0.0
    %949 = vmatprep.mubr.f32.mxu0 0.0
    %950 = vmatmul.mubr.f32.gmra.mrb[0].mxu0 %v809
    %v951 = vpop.f32.mrb[0].mxu0
    %v952 = vadd.f32 %v812, %v951
    %v953 = vpop.f32.mrb[0].mxu0
    %v954 = vadd.f32 %v813, %v953
    %955 = vdwg.mxu0
    %v956 = vmul.f32 %v881, 0.5
    %v957 = vmul.f32 %v883, 0.5
    %v958 = vmul.f32 %v952, 0.5
    %v959 = vtanh.pop %v956
    %v960 = vtanh.pop %v957
    %v961 = vtanh.pop %v958
    %v962 = vmul.f32 %v959, 0.5
    %v963 = vmul.f32 %v960, 0.5
    %v964 = vmul.f32 %v961, 0.5
    %v965 = vadd.f32 %v962, 0.5
    %v966 = vadd.f32 %v963, 0.5
    %v967 = vadd.f32 %v964, 0.5
    %v968 = vtanh.pop %v954
    %v969 = vmul.f32 %v966, %v807
    %v970 = vmul.f32 %v965, %v968
    %v971 = vadd.f32 %v969, %v970
    %v972 = vtanh.pop %v971
    %v973 = vmul.f32 %v967, %v972
    %v974 = vld [vmem:[#allocation2 + $0x60] sm:$0xff]
    %v975 = vld [vmem:[#allocation2 + $0x68] sm:$0xff]
    %v976 = vld [vmem:[#allocation2 + $0x70] sm:$0xff]
    %v977 = vld [vmem:[#allocation2 + $0x78] sm:$0xff]
    %978 = vmatprep.subr.mxu0 %v419
    %979 = vmatpush1.msra.mxu0 %v418
    %980 = vmatprep.subr.mxu0 %v423
    %981 = vmatpush1.msra.mxu0 %v422
    %982 = vmatprep.subr.mxu0 %v427
    %983 = vmatpush1.msra.mxu0 %v426
    %984 = vmatprep.subr.mxu0 %v431
    %985 = vmatpush1.msra.mxu0 %v430
    %986 = vmatprep.subr.mxu0 %v435
    %987 = vmatpush1.msra.mxu0 %v434
    %988 = vmatprep.subr.mxu0 %v439
    %989 = vmatpush1.msra.mxu0 %v438
    %990 = vmatprep.subr.mxu0 %v443
    %991 = vmatpush1.msra.mxu0 %v442
    %992 = vmatprep.subr.mxu0 %v447
    %993 = vmatpush1.msra.mxu0 %v446
    %994 = vmatprep.subr.mxu0 %v451
    %995 = vmatpush1.msra.mxu0 %v450
    %996 = vmatprep.subr.mxu0 %v455
    %997 = vmatpush1.msra.mxu0 %v454
    %998 = vmatprep.subr.mxu0 %v459
    %999 = vmatpush1.msra.mxu0 %v458
    %1000 = vmatprep.subr.mxu0 %v463
    %1001 = vmatpush1.msra.mxu0 %v462
    %1002 = vmatprep.subr.mxu0 %v467
    %1003 = vmatpush1.msra.mxu0 %v466
    %1004 = vmatprep.subr.mxu0 %v471
    %1005 = vmatpush1.msra.mxu0 %v470
    %1006 = vmatprep.subr.mxu0 %v475
    %1007 = vmatpush1.msra.mxu0 %v474
    %1008 = vmatprep.subr.mxu0 %v479
    %1009 = vmatpush1.msra.mxu0 %v478
    %1010 = vmatprep.subr.mxu0 0.0
    %1011 = vmatpush1.msra.mxu0 0.0
    %1012 = vmatprep.subr.mxu0 0.0
    %1013 = vmatpush1.msra.mxu0 0.0
    %1014 = vmatprep.subr.mxu0 0.0
    %1015 = vmatpush1.msra.mxu0 0.0
    %1016 = vmatprep.subr.mxu0 0.0
    %1017 = vmatpush1.msra.mxu0 0.0
    %1018 = vmatprep.subr.mxu0 0.0
    %1019 = vmatpush1.msra.mxu0 0.0
    %1020 = vmatprep.subr.mxu0 0.0
    %1021 = vmatpush1.msra.mxu0 0.0
    %1022 = vmatprep.subr.mxu0 0.0
    %1023 = vmatpush1.msra.mxu0 0.0
    %1024 = vmatprep.subr.mxu0 0.0
    %1025 = vmatpush1.msra.mxu0 0.0
    %1026 = vmatprep.subr.mxu0 0.0
    %1027 = vmatpush1.msra.mxu0 0.0
    %1028 = vmatprep.subr.mxu0 0.0
    %1029 = vmatpush1.msra.mxu0 0.0
    %1030 = vmatprep.subr.mxu0 0.0
    %1031 = vmatpush1.msra.mxu0 0.0
    %1032 = vmatprep.subr.mxu0 0.0
    %1033 = vmatpush1.msra.mxu0 0.0
    %1034 = vmatprep.subr.mxu0 0.0
    %1035 = vmatpush1.msra.mxu0 0.0
    %1036 = vmatprep.subr.mxu0 0.0
    %1037 = vmatpush1.msra.mxu0 0.0
    %1038 = vmatprep.subr.mxu0 0.0
    %1039 = vmatpush1.msra.mxu0 0.0
    %1040 = vmatprep.subr.mxu0 0.0
    %1041 = vmatpush1.msra.mxu0 0.0
    %1042 = vmatprep.mubr.f32.mxu0 0.0
    %1043 = vmatmul.mubr.f32.gmra.mrb[0].mxu0 %v973
    %v1044 = vpop.f32.mrb[0].mxu0
    %v1045 = vadd.f32 %v974, %v1044
    %v1046 = vpop.f32.mrb[0].mxu0
    %v1047 = vadd.f32 %v975, %v1046
    %1048 = vdwg.mxu0
    %1049 = vmatprep.subr.mxu0 %v421
    %1050 = vmatpush1.msra.mxu0 %v420
    %1051 = vmatprep.subr.mxu0 %v425
    %1052 = vmatpush1.msra.mxu0 %v424
    %1053 = vmatprep.subr.mxu0 %v429
    %1054 = vmatpush1.msra.mxu0 %v428
    %1055 = vmatprep.subr.mxu0 %v433
    %1056 = vmatpush1.msra.mxu0 %v432
    %1057 = vmatprep.subr.mxu0 %v437
    %1058 = vmatpush1.msra.mxu0 %v436
    %1059 = vmatprep.subr.mxu0 %v441
    %1060 = vmatpush1.msra.mxu0 %v440
    %1061 = vmatprep.subr.mxu0 %v445
    %1062 = vmatpush1.msra.mxu0 %v444
    %1063 = vmatprep.subr.mxu0 %v449
    %1064 = vmatpush1.msra.mxu0 %v448
    %1065 = vmatprep.subr.mxu0 %v453
    %1066 = vmatpush1.msra.mxu0 %v452
    %1067 = vmatprep.subr.mxu0 %v457
    %1068 = vmatpush1.msra.mxu0 %v456
    %1069 = vmatprep.subr.mxu0 %v461
    %1070 = vmatpush1.msra.mxu0 %v460
    %1071 = vmatprep.subr.mxu0 %v465
    %1072 = vmatpush1.msra.mxu0 %v464
    %1073 = vmatprep.subr.mxu0 %v469
    %1074 = vmatpush1.msra.mxu0 %v468
    %1075 = vmatprep.subr.mxu0 %v473
    %1076 = vmatpush1.msra.mxu0 %v472
    %1077 = vmatprep.subr.mxu0 %v477
    %1078 = vmatpush1.msra.mxu0 %v476
    %1079 = vmatprep.subr.mxu0 %v481
    %1080 = vmatpush1.msra.mxu0 %v480
    %1081 = vmatprep.subr.mxu0 0.0
    %1082 = vmatpush1.msra.mxu0 0.0
    %1083 = vmatprep.subr.mxu0 0.0
    %1084 = vmatpush1.msra.mxu0 0.0
    %1085 = vmatprep.subr.mxu0 0.0
    %1086 = vmatpush1.msra.mxu0 0.0
    %1087 = vmatprep.subr.mxu0 0.0
    %1088 = vmatpush1.msra.mxu0 0.0
    %1089 = vmatprep.subr.mxu0 0.0
    %1090 = vmatpush1.msra.mxu0 0.0
    %1091 = vmatprep.subr.mxu0 0.0
    %1092 = vmatpush1.msra.mxu0 0.0
    %1093 = vmatprep.subr.mxu0 0.0
    %1094 = vmatpush1.msra.mxu0 0.0
    %1095 = vmatprep.subr.mxu0 0.0
    %1096 = vmatpush1.msra.mxu0 0.0
    %1097 = vmatprep.subr.mxu0 0.0
    %1098 = vmatpush1.msra.mxu0 0.0
    %1099 = vmatprep.subr.mxu0 0.0
    %1100 = vmatpush1.msra.mxu0 0.0
    %1101 = vmatprep.subr.mxu0 0.0
    %1102 = vmatpush1.msra.mxu0 0.0
    %1103 = vmatprep.subr.mxu0 0.0
    %1104 = vmatpush1.msra.mxu0 0.0
    %1105 = vmatprep.subr.mxu0 0.0
    %1106 = vmatpush1.msra.mxu0 0.0
    %1107 = vmatprep.subr.mxu0 0.0
    %1108 = vmatpush1.msra.mxu0 0.0
    %1109 = vmatprep.subr.mxu0 0.0
    %1110 = vmatpush1.msra.mxu0 0.0
    %1111 = vmatprep.subr.mxu0 0.0
    %1112 = vmatpush1.msra.mxu0 0.0
    %1113 = vmatprep.mubr.f32.mxu0 0.0
    %1114 = vmatmul.mubr.f32.gmra.mrb[0].mxu0 %v973
    %v1115 = vpop.f32.mrb[0].mxu0
    %v1116 = vadd.f32 %v976, %v1115
    %v1117 = vpop.f32.mrb[0].mxu0
    %v1118 = vadd.f32 %v977, %v1117
    %1119 = vdwg.mxu0
    %v1120 = vmul.f32 %v1045, 0.5
    %v1121 = vmul.f32 %v1047, 0.5
    %v1122 = vmul.f32 %v1116, 0.5
    %v1123 = vtanh.pop %v1120
    %v1124 = vtanh.pop %v1121
    %v1125 = vtanh.pop %v1122
    %v1126 = vmul.f32 %v1123, 0.5
    %v1127 = vmul.f32 %v1124, 0.5
    %v1128 = vmul.f32 %v1125, 0.5
    %v1129 = vadd.f32 %v1126, 0.5
    %v1130 = vadd.f32 %v1127, 0.5
    %v1131 = vadd.f32 %v1128, 0.5
    %v1132 = vtanh.pop %v1118
    %v1133 = vmul.f32 %v1130, %v971
    %v1134 = vmul.f32 %v1129, %v1132
    %v1135 = vadd.f32 %v1133, %v1134
    %v1136 = vtanh.pop %v1135
    %v1137 = vmul.f32 %v1131, %v1136
    %v1138 = vld [vmem:[#allocation2 + $0x80] sm:$0xff]
    %v1139 = vld [vmem:[#allocation2 + $0x88] sm:$0xff]
    %v1140 = vld [vmem:[#allocation2 + $0x90] sm:$0xff]
    %v1141 = vld [vmem:[#allocation2 + $0x98] sm:$0xff]
    %1142 = vmatprep.subr.mxu0 %v419
    %1143 = vmatpush1.msra.mxu0 %v418
    %1144 = vmatprep.subr.mxu0 %v423
    %1145 = vmatpush1.msra.mxu0 %v422
    %1146 = vmatprep.subr.mxu0 %v427
    %1147 = vmatpush1.msra.mxu0 %v426
    %1148 = vmatprep.subr.mxu0 %v431
    %1149 = vmatpush1.msra.mxu0 %v430
    %1150 = vmatprep.subr.mxu0 %v435
    %1151 = vmatpush1.msra.mxu0 %v434
    %1152 = vmatprep.subr.mxu0 %v439
    %1153 = vmatpush1.msra.mxu0 %v438
    %1154 = vmatprep.subr.mxu0 %v443
    %1155 = vmatpush1.msra.mxu0 %v442
    %1156 = vmatprep.subr.mxu0 %v447
    %1157 = vmatpush1.msra.mxu0 %v446
    %1158 = vmatprep.subr.mxu0 %v451
    %1159 = vmatpush1.msra.mxu0 %v450
    %1160 = vmatprep.subr.mxu0 %v455
    %1161 = vmatpush1.msra.mxu0 %v454
    %1162 = vmatprep.subr.mxu0 %v459
    %1163 = vmatpush1.msra.mxu0 %v458
    %1164 = vmatprep.subr.mxu0 %v463
    %1165 = vmatpush1.msra.mxu0 %v462
    %1166 = vmatprep.subr.mxu0 %v467
    %1167 = vmatpush1.msra.mxu0 %v466
    %1168 = vmatprep.subr.mxu0 %v471
    %1169 = vmatpush1.msra.mxu0 %v470
    %1170 = vmatprep.subr.mxu0 %v475
    %1171 = vmatpush1.msra.mxu0 %v474
    %1172 = vmatprep.subr.mxu0 %v479
    %1173 = vmatpush1.msra.mxu0 %v478
    %1174 = vmatprep.subr.mxu0 0.0
    %1175 = vmatpush1.msra.mxu0 0.0
    %1176 = vmatprep.subr.mxu0 0.0
    %1177 = vmatpush1.msra.mxu0 0.0
    %1178 = vmatprep.subr.mxu0 0.0
    %1179 = vmatpush1.msra.mxu0 0.0
    %1180 = vmatprep.subr.mxu0 0.0
    %1181 = vmatpush1.msra.mxu0 0.0
    %1182 = vmatprep.subr.mxu0 0.0
    %1183 = vmatpush1.msra.mxu0 0.0
    %1184 = vmatprep.subr.mxu0 0.0
    %1185 = vmatpush1.msra.mxu0 0.0
    %1186 = vmatprep.subr.mxu0 0.0
    %1187 = vmatpush1.msra.mxu0 0.0
    %1188 = vmatprep.subr.mxu0 0.0
    %1189 = vmatpush1.msra.mxu0 0.0
    %1190 = vmatprep.subr.mxu0 0.0
    %1191 = vmatpush1.msra.mxu0 0.0
    %1192 = vmatprep.subr.mxu0 0.0
    %1193 = vmatpush1.msra.mxu0 0.0
    %1194 = vmatprep.subr.mxu0 0.0
    %1195 = vmatpush1.msra.mxu0 0.0
    %1196 = vmatprep.subr.mxu0 0.0
    %1197 = vmatpush1.msra.mxu0 0.0
    %1198 = vmatprep.subr.mxu0 0.0
    %1199 = vmatpush1.msra.mxu0 0.0
    %1200 = vmatprep.subr.mxu0 0.0
    %1201 = vmatpush1.msra.mxu0 0.0
    %1202 = vmatprep.subr.mxu0 0.0
    %1203 = vmatpush1.msra.mxu0 0.0
    %1204 = vmatprep.subr.mxu0 0.0
    %1205 = vmatpush1.msra.mxu0 0.0
    %1206 = vmatprep.mubr.f32.mxu0 0.0
    %1207 = vmatmul.mubr.f32.gmra.mrb[0].mxu0 %v1137
    %v1208 = vpop.f32.mrb[0].mxu0
    %v1209 = vadd.f32 %v1138, %v1208
    %v1210 = vpop.f32.mrb[0].mxu0
    %v1211 = vadd.f32 %v1139, %v1210
    %1212 = vdwg.mxu0
    %1213 = vmatprep.subr.mxu0 %v421
    %1214 = vmatpush1.msra.mxu0 %v420
    %1215 = vmatprep.subr.mxu0 %v425
    %1216 = vmatpush1.msra.mxu0 %v424
    %1217 = vmatprep.subr.mxu0 %v429
    %1218 = vmatpush1.msra.mxu0 %v428
    %1219 = vmatprep.subr.mxu0 %v433
    %1220 = vmatpush1.msra.mxu0 %v432
    %1221 = vmatprep.subr.mxu0 %v437
    %1222 = vmatpush1.msra.mxu0 %v436
    %1223 = vmatprep.subr.mxu0 %v441
    %1224 = vmatpush1.msra.mxu0 %v440
    %1225 = vmatprep.subr.mxu0 %v445
    %1226 = vmatpush1.msra.mxu0 %v444
    %1227 = vmatprep.subr.mxu0 %v449
    %1228 = vmatpush1.msra.mxu0 %v448
    %1229 = vmatprep.subr.mxu0 %v453
    %1230 = vmatpush1.msra.mxu0 %v452
    %1231 = vmatprep.subr.mxu0 %v457
    %1232 = vmatpush1.msra.mxu0 %v456
    %1233 = vmatprep.subr.mxu0 %v461
    %1234 = vmatpush1.msra.mxu0 %v460
    %1235 = vmatprep.subr.mxu0 %v465
    %1236 = vmatpush1.msra.mxu0 %v464
    %1237 = vmatprep.subr.mxu0 %v469
    %1238 = vmatpush1.msra.mxu0 %v468
    %1239 = vmatprep.subr.mxu0 %v473
    %1240 = vmatpush1.msra.mxu0 %v472
    %1241 = vmatprep.subr.mxu0 %v477
    %1242 = vmatpush1.msra.mxu0 %v476
    %1243 = vmatprep.subr.mxu0 %v481
    %1244 = vmatpush1.msra.mxu0 %v480
    %1245 = vmatprep.subr.mxu0 0.0
    %1246 = vmatpush1.msra.mxu0 0.0
    %1247 = vmatprep.subr.mxu0 0.0
    %1248 = vmatpush1.msra.mxu0 0.0
    %1249 = vmatprep.subr.mxu0 0.0
    %1250 = vmatpush1.msra.mxu0 0.0
    %1251 = vmatprep.subr.mxu0 0.0
    %1252 = vmatpush1.msra.mxu0 0.0
    %1253 = vmatprep.subr.mxu0 0.0
    %1254 = vmatpush1.msra.mxu0 0.0
    %1255 = vmatprep.subr.mxu0 0.0
    %1256 = vmatpush1.msra.mxu0 0.0
    %1257 = vmatprep.subr.mxu0 0.0
    %1258 = vmatpush1.msra.mxu0 0.0
    %1259 = vmatprep.subr.mxu0 0.0
    %1260 = vmatpush1.msra.mxu0 0.0
    %1261 = vmatprep.subr.mxu0 0.0
    %1262 = vmatpush1.msra.mxu0 0.0
    %1263 = vmatprep.subr.mxu0 0.0
    %1264 = vmatpush1.msra.mxu0 0.0
    %1265 = vmatprep.subr.mxu0 0.0
    %1266 = vmatpush1.msra.mxu0 0.0
    %1267 = vmatprep.subr.mxu0 0.0
    %1268 = vmatpush1.msra.mxu0 0.0
    %1269 = vmatprep.subr.mxu0 0.0
    %1270 = vmatpush1.msra.mxu0 0.0
    %1271 = vmatprep.subr.mxu0 0.0
    %1272 = vmatpush1.msra.mxu0 0.0
    %1273 = vmatprep.subr.mxu0 0.0
    %1274 = vmatpush1.msra.mxu0 0.0
    %1275 = vmatprep.subr.mxu0 0.0
    %1276 = vmatpush1.msra.mxu0 0.0
    %1277 = vmatprep.mubr.f32.mxu0 0.0
    %1278 = vmatmul.mubr.f32.gmra.mrb[0].mxu0 %v1137
    %v1279 = vpop.f32.mrb[0].mxu0
    %v1280 = vadd.f32 %v1140, %v1279
    %v1281 = vpop.f32.mrb[0].mxu0
    %v1282 = vadd.f32 %v1141, %v1281
    %1283 = vdwg.mxu0
    %v1284 = vmul.f32 %v1209, 0.5
    %v1285 = vmul.f32 %v1211, 0.5
    %v1286 = vmul.f32 %v1280, 0.5
    %v1287 = vtanh.pop %v1284
    %v1288 = vtanh.pop %v1285
    %v1289 = vtanh.pop %v1286
    %v1290 = vmul.f32 %v1287, 0.5
    %v1291 = vmul.f32 %v1288, 0.5
    %v1292 = vmul.f32 %v1289, 0.5
    %v1293 = vadd.f32 %v1290, 0.5
    %v1294 = vadd.f32 %v1291, 0.5
    %v1295 = vadd.f32 %v1292, 0.5
    %v1296 = vtanh.pop %v1282
    %v1297 = vmul.f32 %v1294, %v1135
    %v1298 = vmul.f32 %v1293, %v1296
    %v1299 = vadd.f32 %v1297, %v1298
    %v1300 = vtanh.pop %v1299
    %v1301 = vmul.f32 %v1295, %v1300
    %v1302 = vld [vmem:[#allocation2 + $0xa0] sm:$0xff]
    %v1303 = vld [vmem:[#allocation2 + $0xa8] sm:$0xff]
    %v1304 = vld [vmem:[#allocation2 + $0xb0] sm:$0xff]
    %v1305 = vld [vmem:[#allocation2 + $0xb8] sm:$0xff]
    %1306 = vmatprep.subr.mxu0 %v419
    %1307 = vmatpush1.msra.mxu0 %v418
    %1308 = vmatprep.subr.mxu0 %v423
    %1309 = vmatpush1.msra.mxu0 %v422
    %1310 = vmatprep.subr.mxu0 %v427
    %1311 = vmatpush1.msra.mxu0 %v426
    %1312 = vmatprep.subr.mxu0 %v431
    %1313 = vmatpush1.msra.mxu0 %v430
    %1314 = vmatprep.subr.mxu0 %v435
    %1315 = vmatpush1.msra.mxu0 %v434
    %1316 = vmatprep.subr.mxu0 %v439
    %1317 = vmatpush1.msra.mxu0 %v438
    %1318 = vmatprep.subr.mxu0 %v443
    %1319 = vmatpush1.msra.mxu0 %v442
    %1320 = vmatprep.subr.mxu0 %v447
    %1321 = vmatpush1.msra.mxu0 %v446
    %1322 = vmatprep.subr.mxu0 %v451
    %1323 = vmatpush1.msra.mxu0 %v450
    %1324 = vmatprep.subr.mxu0 %v455
    %1325 = vmatpush1.msra.mxu0 %v454
    %1326 = vmatprep.subr.mxu0 %v459
    %1327 = vmatpush1.msra.mxu0 %v458
    %1328 = vmatprep.subr.mxu0 %v463
    %1329 = vmatpush1.msra.mxu0 %v462
    %1330 = vmatprep.subr.mxu0 %v467
    %1331 = vmatpush1.msra.mxu0 %v466
    %1332 = vmatprep.subr.mxu0 %v471
    %1333 = vmatpush1.msra.mxu0 %v470
    %1334 = vmatprep.subr.mxu0 %v475
    %1335 = vmatpush1.msra.mxu0 %v474
    %1336 = vmatprep.subr.mxu0 %v479
    %1337 = vmatpush1.msra.mxu0 %v478
    %1338 = vmatprep.subr.mxu0 0.0
    %1339 = vmatpush1.msra.mxu0 0.0
    %1340 = vmatprep.subr.mxu0 0.0
    %1341 = vmatpush1.msra.mxu0 0.0
    %1342 = vmatprep.subr.mxu0 0.0
    %1343 = vmatpush1.msra.mxu0 0.0
    %1344 = vmatprep.subr.mxu0 0.0
    %1345 = vmatpush1.msra.mxu0 0.0
    %1346 = vmatprep.subr.mxu0 0.0
    %1347 = vmatpush1.msra.mxu0 0.0
    %1348 = vmatprep.subr.mxu0 0.0
    %1349 = vmatpush1.msra.mxu0 0.0
    %1350 = vmatprep.subr.mxu0 0.0
    %1351 = vmatpush1.msra.mxu0 0.0
    %1352 = vmatprep.subr.mxu0 0.0
    %1353 = vmatpush1.msra.mxu0 0.0
    %1354 = vmatprep.subr.mxu0 0.0
    %1355 = vmatpush1.msra.mxu0 0.0
    %1356 = vmatprep.subr.mxu0 0.0
    %1357 = vmatpush1.msra.mxu0 0.0
    %1358 = vmatprep.subr.mxu0 0.0
    %1359 = vmatpush1.msra.mxu0 0.0
    %1360 = vmatprep.subr.mxu0 0.0
    %1361 = vmatpush1.msra.mxu0 0.0
    %1362 = vmatprep.subr.mxu0 0.0
    %1363 = vmatpush1.msra.mxu0 0.0
    %1364 = vmatprep.subr.mxu0 0.0
    %1365 = vmatpush1.msra.mxu0 0.0
    %1366 = vmatprep.subr.mxu0 0.0
    %1367 = vmatpush1.msra.mxu0 0.0
    %1368 = vmatprep.subr.mxu0 0.0
    %1369 = vmatpush1.msra.mxu0 0.0
    %1370 = vmatprep.mubr.f32.mxu0 0.0
    %1371 = vmatmul.mubr.f32.gmra.mrb[0].mxu0 %v1301
    %v1372 = vpop.f32.mrb[0].mxu0
    %v1373 = vadd.f32 %v1302, %v1372
    %v1374 = vpop.f32.mrb[0].mxu0
    %v1375 = vadd.f32 %v1303, %v1374
    %1376 = vdwg.mxu0
    %1377 = vmatprep.subr.mxu0 %v421
    %1378 = vmatpush1.msra.mxu0 %v420
    %1379 = vmatprep.subr.mxu0 %v425
    %1380 = vmatpush1.msra.mxu0 %v424
    %1381 = vmatprep.subr.mxu0 %v429
    %1382 = vmatpush1.msra.mxu0 %v428
    %1383 = vmatprep.subr.mxu0 %v433
    %1384 = vmatpush1.msra.mxu0 %v432
    %1385 = vmatprep.subr.mxu0 %v437
    %1386 = vmatpush1.msra.mxu0 %v436
    %1387 = vmatprep.subr.mxu0 %v441
    %1388 = vmatpush1.msra.mxu0 %v440
    %1389 = vmatprep.subr.mxu0 %v445
    %1390 = vmatpush1.msra.mxu0 %v444
    %1391 = vmatprep.subr.mxu0 %v449
    %1392 = vmatpush1.msra.mxu0 %v448
    %1393 = vmatprep.subr.mxu0 %v453
    %1394 = vmatpush1.msra.mxu0 %v452
    %1395 = vmatprep.subr.mxu0 %v457
    %1396 = vmatpush1.msra.mxu0 %v456
    %1397 = vmatprep.subr.mxu0 %v461
    %1398 = vmatpush1.msra.mxu0 %v460
    %1399 = vmatprep.subr.mxu0 %v465
    %1400 = vmatpush1.msra.mxu0 %v464
    %1401 = vmatprep.subr.mxu0 %v469
    %1402 = vmatpush1.msra.mxu0 %v468
    %1403 = vmatprep.subr.mxu0 %v473
    %1404 = vmatpush1.msra.mxu0 %v472
    %1405 = vmatprep.subr.mxu0 %v477
    %1406 = vmatpush1.msra.mxu0 %v476
    %1407 = vmatprep.subr.mxu0 %v481
    %1408 = vmatpush1.msra.mxu0 %v480
    %1409 = vmatprep.subr.mxu0 0.0
    %1410 = vmatpush1.msra.mxu0 0.0
    %1411 = vmatprep.subr.mxu0 0.0
    %1412 = vmatpush1.msra.mxu0 0.0
    %1413 = vmatprep.subr.mxu0 0.0
    %1414 = vmatpush1.msra.mxu0 0.0
    %1415 = vmatprep.subr.mxu0 0.0
    %1416 = vmatpush1.msra.mxu0 0.0
    %1417 = vmatprep.subr.mxu0 0.0
    %1418 = vmatpush1.msra.mxu0 0.0
    %1419 = vmatprep.subr.mxu0 0.0
    %1420 = vmatpush1.msra.mxu0 0.0
    %1421 = vmatprep.subr.mxu0 0.0
    %1422 = vmatpush1.msra.mxu0 0.0
    %1423 = vmatprep.subr.mxu0 0.0
    %1424 = vmatpush1.msra.mxu0 0.0
    %1425 = vmatprep.subr.mxu0 0.0
    %1426 = vmatpush1.msra.mxu0 0.0
    %1427 = vmatprep.subr.mxu0 0.0
    %1428 = vmatpush1.msra.mxu0 0.0
    %1429 = vmatprep.subr.mxu0 0.0
    %1430 = vmatpush1.msra.mxu0 0.0
    %1431 = vmatprep.subr.mxu0 0.0
    %1432 = vmatpush1.msra.mxu0 0.0
    %1433 = vmatprep.subr.mxu0 0.0
    %1434 = vmatpush1.msra.mxu0 0.0
    %1435 = vmatprep.subr.mxu0 0.0
    %1436 = vmatpush1.msra.mxu0 0.0
    %1437 = vmatprep.subr.mxu0 0.0
    %1438 = vmatpush1.msra.mxu0 0.0
    %1439 = vmatprep.subr.mxu0 0.0
    %1440 = vmatpush1.msra.mxu0 0.0
    %1441 = vmatprep.mubr.f32.mxu0 0.0
    %1442 = vmatmul.mubr.f32.gmra.mrb[0].mxu0 %v1301
    %v1443 = vpop.f32.mrb[0].mxu0
    %v1444 = vadd.f32 %v1304, %v1443
    %v1445 = vpop.f32.mrb[0].mxu0
    %v1446 = vadd.f32 %v1305, %v1445
    %1447 = vdwg.mxu0
    %v1448 = vmul.f32 %v1373, 0.5
    %v1449 = vmul.f32 %v1375, 0.5
    %v1450 = vmul.f32 %v1444, 0.5
    %v1451 = vtanh.pop %v1448
    %v1452 = vtanh.pop %v1449
    %v1453 = vtanh.pop %v1450
    %v1454 = vmul.f32 %v1451, 0.5
    %v1455 = vmul.f32 %v1452, 0.5
    %v1456 = vmul.f32 %v1453, 0.5
    %v1457 = vadd.f32 %v1454, 0.5
    %v1458 = vadd.f32 %v1455, 0.5
    %v1459 = vadd.f32 %v1456, 0.5
    %v1460 = vtanh.pop %v1446
    %v1461 = vmul.f32 %v1458, %v1299
    %v1462 = vmul.f32 %v1457, %v1460
    %v1463 = vadd.f32 %v1461, %v1462
    %v1464 = vtanh.pop %v1463
    %v1465 = vmul.f32 %v1459, %v1464
    %v1466 = vld [vmem:[#allocation2 + $0xc0] sm:$0xff]
    %v1467 = vld [vmem:[#allocation2 + $0xc8] sm:$0xff]
    %v1468 = vld [vmem:[#allocation2 + $0xd0] sm:$0xff]
    %v1469 = vld [vmem:[#allocation2 + $0xd8] sm:$0xff]
    %1470 = vmatprep.subr.mxu0 %v419
    %1471 = vmatpush1.msra.mxu0 %v418
    %1472 = vmatprep.subr.mxu0 %v423
    %1473 = vmatpush1.msra.mxu0 %v422
    %1474 = vmatprep.subr.mxu0 %v427
    %1475 = vmatpush1.msra.mxu0 %v426
    %1476 = vmatprep.subr.mxu0 %v431
    %1477 = vmatpush1.msra.mxu0 %v430
    %1478 = vmatprep.subr.mxu0 %v435
    %1479 = vmatpush1.msra.mxu0 %v434
    %1480 = vmatprep.subr.mxu0 %v439
    %1481 = vmatpush1.msra.mxu0 %v438
    %1482 = vmatprep.subr.mxu0 %v443
    %1483 = vmatpush1.msra.mxu0 %v442
    %1484 = vmatprep.subr.mxu0 %v447
    %1485 = vmatpush1.msra.mxu0 %v446
    %1486 = vmatprep.subr.mxu0 %v451
    %1487 = vmatpush1.msra.mxu0 %v450
    %1488 = vmatprep.subr.mxu0 %v455
    %1489 = vmatpush1.msra.mxu0 %v454
    %1490 = vmatprep.subr.mxu0 %v459
    %1491 = vmatpush1.msra.mxu0 %v458
    %1492 = vmatprep.subr.mxu0 %v463
    %1493 = vmatpush1.msra.mxu0 %v462
    %1494 = vmatprep.subr.mxu0 %v467
    %1495 = vmatpush1.msra.mxu0 %v466
    %1496 = vmatprep.subr.mxu0 %v471
    %1497 = vmatpush1.msra.mxu0 %v470
    %1498 = vmatprep.subr.mxu0 %v475
    %1499 = vmatpush1.msra.mxu0 %v474
    %1500 = vmatprep.subr.mxu0 %v479
    %1501 = vmatpush1.msra.mxu0 %v478
    %1502 = vmatprep.subr.mxu0 0.0
    %1503 = vmatpush1.msra.mxu0 0.0
    %1504 = vmatprep.subr.mxu0 0.0
    %1505 = vmatpush1.msra.mxu0 0.0
    %1506 = vmatprep.subr.mxu0 0.0
    %1507 = vmatpush1.msra.mxu0 0.0
    %1508 = vmatprep.subr.mxu0 0.0
    %1509 = vmatpush1.msra.mxu0 0.0
    %1510 = vmatprep.subr.mxu0 0.0
    %1511 = vmatpush1.msra.mxu0 0.0
    %1512 = vmatprep.subr.mxu0 0.0
    %1513 = vmatpush1.msra.mxu0 0.0
    %1514 = vmatprep.subr.mxu0 0.0
    %1515 = vmatpush1.msra.mxu0 0.0
    %1516 = vmatprep.subr.mxu0 0.0
    %1517 = vmatpush1.msra.mxu0 0.0
    %1518 = vmatprep.subr.mxu0 0.0
    %1519 = vmatpush1.msra.mxu0 0.0
    %1520 = vmatprep.subr.mxu0 0.0
    %1521 = vmatpush1.msra.mxu0 0.0
    %1522 = vmatprep.subr.mxu0 0.0
    %1523 = vmatpush1.msra.mxu0 0.0
    %1524 = vmatprep.subr.mxu0 0.0
    %1525 = vmatpush1.msra.mxu0 0.0
    %1526 = vmatprep.subr.mxu0 0.0
    %1527 = vmatpush1.msra.mxu0 0.0
    %1528 = vmatprep.subr.mxu0 0.0
    %1529 = vmatpush1.msra.mxu0 0.0
    %1530 = vmatprep.subr.mxu0 0.0
    %1531 = vmatpush1.msra.mxu0 0.0
    %1532 = vmatprep.subr.mxu0 0.0
    %1533 = vmatpush1.msra.mxu0 0.0
    %1534 = vmatprep.mubr.f32.mxu0 0.0
    %1535 = vmatmul.mubr.f32.gmra.mrb[0].mxu0 %v1465
    %v1536 = vpop.f32.mrb[0].mxu0
    %v1537 = vadd.f32 %v1466, %v1536
    %v1538 = vpop.f32.mrb[0].mxu0
    %v1539 = vadd.f32 %v1467, %v1538
    %1540 = vdwg.mxu0
    %1541 = vmatprep.subr.mxu0 %v421
    %1542 = vmatpush1.msra.mxu0 %v420
    %1543 = vmatprep.subr.mxu0 %v425
    %1544 = vmatpush1.msra.mxu0 %v424
    %1545 = vmatprep.subr.mxu0 %v429
    %1546 = vmatpush1.msra.mxu0 %v428
    %1547 = vmatprep.subr.mxu0 %v433
    %1548 = vmatpush1.msra.mxu0 %v432
    %1549 = vmatprep.subr.mxu0 %v437
    %1550 = vmatpush1.msra.mxu0 %v436
    %1551 = vmatprep.subr.mxu0 %v441
    %1552 = vmatpush1.msra.mxu0 %v440
    %1553 = vmatprep.subr.mxu0 %v445
    %1554 = vmatpush1.msra.mxu0 %v444
    %1555 = vmatprep.subr.mxu0 %v449
    %1556 = vmatpush1.msra.mxu0 %v448
    %1557 = vmatprep.subr.mxu0 %v453
    %1558 = vmatpush1.msra.mxu0 %v452
    %1559 = vmatprep.subr.mxu0 %v457
    %1560 = vmatpush1.msra.mxu0 %v456
    %1561 = vmatprep.subr.mxu0 %v461
    %1562 = vmatpush1.msra.mxu0 %v460
    %1563 = vmatprep.subr.mxu0 %v465
    %1564 = vmatpush1.msra.mxu0 %v464
    %1565 = vmatprep.subr.mxu0 %v469
    %1566 = vmatpush1.msra.mxu0 %v468
    %1567 = vmatprep.subr.mxu0 %v473
    %1568 = vmatpush1.msra.mxu0 %v472
    %1569 = vmatprep.subr.mxu0 %v477
    %1570 = vmatpush1.msra.mxu0 %v476
    %1571 = vmatprep.subr.mxu0 %v481
    %1572 = vmatpush1.msra.mxu0 %v480
    %1573 = vmatprep.subr.mxu0 0.0
    %1574 = vmatpush1.msra.mxu0 0.0
    %1575 = vmatprep.subr.mxu0 0.0
    %1576 = vmatpush1.msra.mxu0 0.0
    %1577 = vmatprep.subr.mxu0 0.0
    %1578 = vmatpush1.msra.mxu0 0.0
    %1579 = vmatprep.subr.mxu0 0.0
    %1580 = vmatpush1.msra.mxu0 0.0
    %1581 = vmatprep.subr.mxu0 0.0
    %1582 = vmatpush1.msra.mxu0 0.0
    %1583 = vmatprep.subr.mxu0 0.0
    %1584 = vmatpush1.msra.mxu0 0.0
    %1585 = vmatprep.subr.mxu0 0.0
    %1586 = vmatpush1.msra.mxu0 0.0
    %1587 = vmatprep.subr.mxu0 0.0
    %1588 = vmatpush1.msra.mxu0 0.0
    %1589 = vmatprep.subr.mxu0 0.0
    %1590 = vmatpush1.msra.mxu0 0.0
    %1591 = vmatprep.subr.mxu0 0.0
    %1592 = vmatpush1.msra.mxu0 0.0
    %1593 = vmatprep.subr.mxu0 0.0
    %1594 = vmatpush1.msra.mxu0 0.0
    %1595 = vmatprep.subr.mxu0 0.0
    %1596 = vmatpush1.msra.mxu0 0.0
    %1597 = vmatprep.subr.mxu0 0.0
    %1598 = vmatpush1.msra.mxu0 0.0
    %1599 = vmatprep.subr.mxu0 0.0
    %1600 = vmatpush1.msra.mxu0 0.0
    %1601 = vmatprep.subr.mxu0 0.0
    %1602 = vmatpush1.msra.mxu0 0.0
    %1603 = vmatprep.subr.mxu0 0.0
    %1604 = vmatpush1.msra.mxu0 0.0
    %1605 = vmatprep.mubr.f32.mxu0 0.0
    %1606 = vmatmul.mubr.f32.gmra.mrb[0].mxu0 %v1465
    %v1607 = vpop.f32.mrb[0].mxu0
    %v1608 = vadd.f32 %v1468, %v1607
    %v1609 = vpop.f32.mrb[0].mxu0
    %v1610 = vadd.f32 %v1469, %v1609
    %1611 = vdwg.mxu0
    %v1612 = vmul.f32 %v1537, 0.5
    %v1613 = vmul.f32 %v1539, 0.5
    %v1614 = vmul.f32 %v1608, 0.5
    %v1615 = vtanh.pop %v1612
    %v1616 = vtanh.pop %v1613
    %v1617 = vtanh.pop %v1614
    %v1618 = vmul.f32 %v1615, 0.5
    %v1619 = vmul.f32 %v1616, 0.5
    %v1620 = vmul.f32 %v1617, 0.5
    %v1621 = vadd.f32 %v1618, 0.5
    %v1622 = vadd.f32 %v1619, 0.5
    %v1623 = vadd.f32 %v1620, 0.5
    %v1624 = vtanh.pop %v1610
    %v1625 = vmul.f32 %v1622, %v1463
    %v1626 = vmul.f32 %v1621, %v1624
    %v1627 = vadd.f32 %v1625, %v1626
    %v1628 = vtanh.pop %v1627
    %v1629 = vmul.f32 %v1623, %v1628
    %v1630 = vld [vmem:[#allocation2 + $0xe0] sm:$0xff]
    %v1631 = vld [vmem:[#allocation2 + $0xe8] sm:$0xff]
    %v1632 = vld [vmem:[#allocation2 + $0xf0] sm:$0xff]
    %v1633 = vld [vmem:[#allocation2 + $0xf8] sm:$0xff]
    %1634 = vmatprep.subr.mxu0 %v419
    %1635 = vmatpush1.msra.mxu0 %v418
    %1636 = vmatprep.subr.mxu0 %v423
    %1637 = vmatpush1.msra.mxu0 %v422
    %1638 = vmatprep.subr.mxu0 %v427
    %1639 = vmatpush1.msra.mxu0 %v426
    %1640 = vmatprep.subr.mxu0 %v431
    %1641 = vmatpush1.msra.mxu0 %v430
    %1642 = vmatprep.subr.mxu0 %v435
    %1643 = vmatpush1.msra.mxu0 %v434
    %1644 = vmatprep.subr.mxu0 %v439
    %1645 = vmatpush1.msra.mxu0 %v438
    %1646 = vmatprep.subr.mxu0 %v443
    %1647 = vmatpush1.msra.mxu0 %v442
    %1648 = vmatprep.subr.mxu0 %v447
    %1649 = vmatpush1.msra.mxu0 %v446
    %1650 = vmatprep.subr.mxu0 %v451
    %1651 = vmatpush1.msra.mxu0 %v450
    %1652 = vmatprep.subr.mxu0 %v455
    %1653 = vmatpush1.msra.mxu0 %v454
    %1654 = vmatprep.subr.mxu0 %v459
    %1655 = vmatpush1.msra.mxu0 %v458
    %1656 = vmatprep.subr.mxu0 %v463
    %1657 = vmatpush1.msra.mxu0 %v462
    %1658 = vmatprep.subr.mxu0 %v467
    %1659 = vmatpush1.msra.mxu0 %v466
    %1660 = vmatprep.subr.mxu0 %v471
    %1661 = vmatpush1.msra.mxu0 %v470
    %1662 = vmatprep.subr.mxu0 %v475
    %1663 = vmatpush1.msra.mxu0 %v474
    %1664 = vmatprep.subr.mxu0 %v479
    %1665 = vmatpush1.msra.mxu0 %v478
    %1666 = vmatprep.subr.mxu0 0.0
    %1667 = vmatpush1.msra.mxu0 0.0
    %1668 = vmatprep.subr.mxu0 0.0
    %1669 = vmatpush1.msra.mxu0 0.0
    %1670 = vmatprep.subr.mxu0 0.0
    %1671 = vmatpush1.msra.mxu0 0.0
    %1672 = vmatprep.subr.mxu0 0.0
    %1673 = vmatpush1.msra.mxu0 0.0
    %1674 = vmatprep.subr.mxu0 0.0
    %1675 = vmatpush1.msra.mxu0 0.0
    %1676 = vmatprep.subr.mxu0 0.0
    %1677 = vmatpush1.msra.mxu0 0.0
    %1678 = vmatprep.subr.mxu0 0.0
    %1679 = vmatpush1.msra.mxu0 0.0
    %1680 = vmatprep.subr.mxu0 0.0
    %1681 = vmatpush1.msra.mxu0 0.0
    %1682 = vmatprep.subr.mxu0 0.0
    %1683 = vmatpush1.msra.mxu0 0.0
    %1684 = vmatprep.subr.mxu0 0.0
    %1685 = vmatpush1.msra.mxu0 0.0
    %1686 = vmatprep.subr.mxu0 0.0
    %1687 = vmatpush1.msra.mxu0 0.0
    %1688 = vmatprep.subr.mxu0 0.0
    %1689 = vmatpush1.msra.mxu0 0.0
    %1690 = vmatprep.subr.mxu0 0.0
    %1691 = vmatpush1.msra.mxu0 0.0
    %1692 = vmatprep.subr.mxu0 0.0
    %1693 = vmatpush1.msra.mxu0 0.0
    %1694 = vmatprep.subr.mxu0 0.0
    %1695 = vmatpush1.msra.mxu0 0.0
    %1696 = vmatprep.subr.mxu0 0.0
    %1697 = vmatpush1.msra.mxu0 0.0
    %1698 = vmatprep.mubr.f32.mxu0 0.0
    %1699 = vmatmul.mubr.f32.gmra.mrb[0].mxu0 %v1629
    %v1700 = vpop.f32.mrb[0].mxu0
    %v1701 = vadd.f32 %v1630, %v1700
    %v1702 = vpop.f32.mrb[0].mxu0
    %v1703 = vadd.f32 %v1631, %v1702
    %1704 = vdwg.mxu0
    %1705 = vmatprep.subr.mxu0 %v421
    %1706 = vmatpush1.msra.mxu0 %v420
    %1707 = vmatprep.subr.mxu0 %v425
    %1708 = vmatpush1.msra.mxu0 %v424
    %1709 = vmatprep.subr.mxu0 %v429
    %1710 = vmatpush1.msra.mxu0 %v428
    %1711 = vmatprep.subr.mxu0 %v433
    %1712 = vmatpush1.msra.mxu0 %v432
    %1713 = vmatprep.subr.mxu0 %v437
    %1714 = vmatpush1.msra.mxu0 %v436
    %1715 = vmatprep.subr.mxu0 %v441
    %1716 = vmatpush1.msra.mxu0 %v440
    %1717 = vmatprep.subr.mxu0 %v445
    %1718 = vmatpush1.msra.mxu0 %v444
    %1719 = vmatprep.subr.mxu0 %v449
    %1720 = vmatpush1.msra.mxu0 %v448
    %1721 = vmatprep.subr.mxu0 %v453
    %1722 = vmatpush1.msra.mxu0 %v452
    %1723 = vmatprep.subr.mxu0 %v457
    %1724 = vmatpush1.msra.mxu0 %v456
    %1725 = vmatprep.subr.mxu0 %v461
    %1726 = vmatpush1.msra.mxu0 %v460
    %1727 = vmatprep.subr.mxu0 %v465
    %1728 = vmatpush1.msra.mxu0 %v464
    %1729 = vmatprep.subr.mxu0 %v469
    %1730 = vmatpush1.msra.mxu0 %v468
    %1731 = vmatprep.subr.mxu0 %v473
    %1732 = vmatpush1.msra.mxu0 %v472
    %1733 = vmatprep.subr.mxu0 %v477
    %1734 = vmatpush1.msra.mxu0 %v476
    %1735 = vmatprep.subr.mxu0 %v481
    %1736 = vmatpush1.msra.mxu0 %v480
    %1737 = vmatprep.subr.mxu0 0.0
    %1738 = vmatpush1.msra.mxu0 0.0
    %1739 = vmatprep.subr.mxu0 0.0
    %1740 = vmatpush1.msra.mxu0 0.0
    %1741 = vmatprep.subr.mxu0 0.0
    %1742 = vmatpush1.msra.mxu0 0.0
    %1743 = vmatprep.subr.mxu0 0.0
    %1744 = vmatpush1.msra.mxu0 0.0
    %1745 = vmatprep.subr.mxu0 0.0
    %1746 = vmatpush1.msra.mxu0 0.0
    %1747 = vmatprep.subr.mxu0 0.0
    %1748 = vmatpush1.msra.mxu0 0.0
    %1749 = vmatprep.subr.mxu0 0.0
    %1750 = vmatpush1.msra.mxu0 0.0
    %1751 = vmatprep.subr.mxu0 0.0
    %1752 = vmatpush1.msra.mxu0 0.0
    %1753 = vmatprep.subr.mxu0 0.0
    %1754 = vmatpush1.msra.mxu0 0.0
    %1755 = vmatprep.subr.mxu0 0.0
    %1756 = vmatpush1.msra.mxu0 0.0
    %1757 = vmatprep.subr.mxu0 0.0
    %1758 = vmatpush1.msra.mxu0 0.0
    %1759 = vmatprep.subr.mxu0 0.0
    %1760 = vmatpush1.msra.mxu0 0.0
    %1761 = vmatprep.subr.mxu0 0.0
    %1762 = vmatpush1.msra.mxu0 0.0
    %1763 = vmatprep.subr.mxu0 0.0
    %1764 = vmatpush1.msra.mxu0 0.0
    %1765 = vmatprep.subr.mxu0 0.0
    %1766 = vmatpush1.msra.mxu0 0.0
    %1767 = vmatprep.subr.mxu0 0.0
    %1768 = vmatpush1.msra.mxu0 0.0
    %1769 = vmatprep.mubr.f32.mxu0 0.0
    %1770 = vmatmul.mubr.f32.gmra.mrb[0].mxu0 %v1629
    %v1771 = vpop.f32.mrb[0].mxu0
    %v1772 = vadd.f32 %v1632, %v1771
    %v1773 = vpop.f32.mrb[0].mxu0
    %v1774 = vadd.f32 %v1633, %v1773
    %1775 = vdwg.mxu0
    %v1776 = vmul.f32 %v1701, 0.5
    %v1777 = vmul.f32 %v1703, 0.5
    %v1778 = vmul.f32 %v1772, 0.5
    %v1779 = vtanh.pop %v1776
    %v1780 = vtanh.pop %v1777
    %v1781 = vtanh.pop %v1778
    %v1782 = vmul.f32 %v1779, 0.5
    %v1783 = vmul.f32 %v1780, 0.5
    %v1784 = vmul.f32 %v1781, 0.5
    %v1785 = vadd.f32 %v1782, 0.5
    %v1786 = vadd.f32 %v1783, 0.5
    %v1787 = vadd.f32 %v1784, 0.5
    %v1788 = vtanh.pop %v1774
    %v1789 = vmul.f32 %v1786, %v1627
    %v1790 = vmul.f32 %v1785, %v1788
    %v1791 = vadd.f32 %v1789, %v1790
    %v1792 = vtanh.pop %v1791
    %v1793 = vmul.f32 %v1787, %v1792
    %v1794 = vld [vmem:[%s4] sm:$0x1]
    %v1796 = vlaneseq
    %v1797 = vshrl.u32 %v1796, 7
    %v1798 = vsub.s32 0, %v1797
    %v1799 = vrot.slane %v1794, %v1798
    %v1801 = vmul.f32 %v1793, %v1799
    %1802 = vadd.xlane.f32.xlu0 %v1801
    %v1803 = vpop.xlane.xlu0 %1802
    %v1804 = vld [vmem:[#allocation3] sm:$0x1]
    %v1806 = vlaneseq
    %v1807 = vshrl.u32 %v1806, 7
    %v1808 = vsub.s32 0, %v1807
    %v1809 = vrot.slane %v1804, %v1808
    %v1811 = vadd.f32 %v1803, %v1809
    %vm1812 = vcmask 7168
    %1813 = vst.msk [vmem:[%s6] sm:$0xff] %vm1812, %v1811
    // Predicated region
    $region38: #{tpu_custom_call.1} parent=1 // pred_check
      _
    $region39: #{tpu_custom_call.1} parent=1 // pred_check_branch
      %1815 = sbr.rel (0) target = $region41
    $region40: #{tpu_custom_call.1} parent=1 // pred_region
      _
    $region41: #{tpu_custom_call.1} parent=1 // pred_fallthru
      _
    // Predicated region
    $region42: #{tpu_custom_call.1} parent=1 // pred_check
      _
    $region43: #{tpu_custom_call.1} parent=1 // pred_check_branch
      %1817 = sbr.rel (0) target = $region45
    $region44: #{tpu_custom_call.1} parent=1 // pred_region
      _
    $region45: #{tpu_custom_call.1} parent=1 // pred_fallthru
      _
    %1818 = vsyncpa [#allocation5], 1
    %1819 = vsyncpa [#allocation7], 1

</llo_original>
